<compile_context>
chip_gen: v7x
topology: tpu7x:2x2x1
jax: 0.10.0
libtpu: 0.0.40
codegen_flags: <defaults>
</compile_context>

<pallas_src>
import functools
import math

import jax
import jax.numpy as jnp
from jax.experimental import pallas as pl
from jax.experimental.pallas import tpu as pltpu

# ----------------------------- small RoBERTa config -----------------------------
VOCAB = 100
PAD_ID = 1            # RoBERTa padding_idx
HIDDEN = 32
N_HEADS = 2
HEAD_DIM = HIDDEN // N_HEADS
INTERMEDIATE = 64
N_LAYERS = 2
MAX_POS = 40          # num_position_embeddings (synthetic stand-in for the repeated table)
TYPE_VOCAB = 2        # num_segments in the module
LN_EPS = 1e-5


# ----------------------------- in-kernel helpers -----------------------------
def _layernorm(x, g, b):
    mu = jnp.mean(x, axis=-1, keepdims=True)
    var = jnp.mean(jnp.square(x - mu), axis=-1, keepdims=True)
    return (x - mu) * jax.lax.rsqrt(var + LN_EPS) * g + b


def _erf(x):
    # Abramowitz & Stegun 7.1.26, max abs error 1.5e-7 (effectively exact in f32).
    a1, a2, a3, a4, a5 = 0.254829592, -0.284496736, 1.421413741, -1.453152027, 1.061405429
    p = 0.3275911
    ax = jnp.abs(x)
    t = 1.0 / (1.0 + p * ax)
    poly = t * (a1 + t * (a2 + t * (a3 + t * (a4 + t * a5))))
    y = 1.0 - poly * jnp.exp(-ax * ax)
    return jnp.where(x < 0.0, -y, y)


def _gelu_erf(x):
    # Exact (erf) GELU, matching HF RoBERTa's "gelu" activation.
    return 0.5 * x * (1.0 + _erf(x * 0.7071067811865476))


# ----------------------------- fused encoder kernel -----------------------------
def _encoder_kernel(emb_ref, bias_ref, eg_ref, eb_ref,
                    qkv_w_ref, qkv_b_ref, ow_ref, ob_ref,
                    ag_ref, ab_ref,
                    f1w_ref, f1b_ref, f2w_ref, f2b_ref,
                    fg_ref, fb_ref,
                    out_ref, *, batch, seq):
    layer = pl.program_id(0)

    # Layer 0: initialize the VMEM-resident residual stream with the embedding LayerNorm.
    @pl.when(layer == 0)
    def _():
        out_ref[...] = _layernorm(emb_ref[...], eg_ref[...], eb_ref[...])

    h = out_ref[...]                          # (M, H) residual stream, stays in VMEM
    m, hidden = h.shape
    scale = 1.0 / math.sqrt(HEAD_DIM)

    # ---- fused QKV projection: one (M,H) @ (H,3H) MXU op ----
    qkv = jnp.dot(h, qkv_w_ref[0], preferred_element_type=jnp.float32) + qkv_b_ref[0]
    q = qkv[:, 0 * hidden:1 * hidden].reshape(batch, seq, hidden)
    k = qkv[:, 1 * hidden:2 * hidden].reshape(batch, seq, hidden)
    v = qkv[:, 2 * hidden:3 * hidden].reshape(batch, seq, hidden)
    bias = bias_ref[...]                      # (B, 1, S) additive mask, broadcasts over queries

    ow = ow_ref[0]                            # (H, H) output projection weight
    attn_out = jnp.zeros((m, hidden), jnp.float32)

    # ---- multi-head attention, heads unrolled; output projection folded in per head ----
    for hh in range(N_HEADS):
        sl = slice(hh * HEAD_DIM, (hh + 1) * HEAD_DIM)
        qh, kh, vh = q[:, :, sl], k[:, :, sl], v[:, :, sl]
        # scores: contract head_dim of q against head_dim of k (no explicit transpose)
        s = jax.lax.dot_general(qh, kh, (((2,), (2,)), ((0,), (0,))),
                                preferred_element_type=jnp.float32) * scale   # (B, S, S)
        s = s + bias
        s = s - jnp.max(s, axis=-1, keepdims=True)
        p_attn = jnp.exp(s)
        p_attn = p_attn * pl.reciprocal(jnp.sum(p_attn, axis=-1, keepdims=True), approx=True)
        ctx_h = jax.lax.dot_general(p_attn, vh, (((2,), (1,)), ((0,), (0,))),
                                    preferred_element_type=jnp.float32)        # (B, S, D)
        # o_proj(concat(heads)) == sum_h ctx_h @ o_w[rows of head h]
        attn_out = attn_out + jnp.dot(ctx_h.reshape(m, HEAD_DIM), ow[sl, :],
                                      preferred_element_type=jnp.float32)
    attn_out = attn_out + ob_ref[0]

    # ---- Add & LayerNorm (attention) ----
    h = _layernorm(attn_out + h, ag_ref[0], ab_ref[0])

    # ---- FFN: GELU(h @ W1 + b1) @ W2 + b2, then Add & LayerNorm ----
    ff = jnp.dot(h, f1w_ref[0], preferred_element_type=jnp.float32) + f1b_ref[0]
    ff = _gelu_erf(ff)
    ff = jnp.dot(ff, f2w_ref[0], preferred_element_type=jnp.float32) + f2b_ref[0]
    out_ref[...] = _layernorm(ff + h, fg_ref[0], fb_ref[0])


def encoder_fused(emb, attn_bias, p):
    m, hidden = emb.shape
    b = attn_bias.shape[0]
    seq = attn_bias.shape[2]

    def full(shape):
        # whole array, same block every grid step (stays resident / tiny)
        return pl.BlockSpec(shape, lambda l, _n=len(shape): (0,) * _n)

    def per_layer(shape):
        # leading dim indexed by the layer grid axis
        return pl.BlockSpec((1,) + shape[1:],
                            lambda l, _n=len(shape): (l,) + (0,) * (_n - 1))

    return pl.pallas_call(
        functools.partial(_encoder_kernel, batch=b, seq=seq),
        out_shape=jax.ShapeDtypeStruct((m, hidden), jnp.float32),
        grid=(N_LAYERS,),
        in_specs=[
            full((m, hidden)),            # summed embeddings
            full((b, 1, seq)),            # additive attention bias
            full((1, hidden)),            # embedding LN gamma
            full((1, hidden)),            # embedding LN beta
            per_layer(p["qkv_w"].shape), per_layer(p["qkv_b"].shape),
            per_layer(p["o_w"].shape), per_layer(p["o_b"].shape),
            per_layer(p["attn_ln_g"].shape), per_layer(p["attn_ln_b"].shape),
            per_layer(p["ff1_w"].shape), per_layer(p["ff1_b"].shape),
            per_layer(p["ff2_w"].shape), per_layer(p["ff2_b"].shape),
            per_layer(p["ffn_ln_g"].shape), per_layer(p["ffn_ln_b"].shape),
        ],
        out_specs=pl.BlockSpec((m, hidden), lambda l: (0, 0)),
        compiler_params=pltpu.CompilerParams(
            dimension_semantics=("arbitrary",)),   # layers are sequentially dependent
    )(emb, attn_bias, p["emb_ln_g"], p["emb_ln_b"],
      p["qkv_w"], p["qkv_b"], p["o_w"], p["o_b"],
      p["attn_ln_g"], p["attn_ln_b"],
      p["ff1_w"], p["ff1_b"], p["ff2_w"], p["ff2_b"],
      p["ffn_ln_g"], p["ffn_ln_b"])


# ----------------------------- model glue (plain JAX) -----------------------------
def init_params(key):
    keys = iter(jax.random.split(key, 32))

    def nrm(shape, scale=0.02):
        return (scale * jax.random.normal(next(keys), shape)).astype(jnp.float32)

    L, H, I = N_LAYERS, HIDDEN, INTERMEDIATE
    return {
        "word_emb": nrm((VOCAB, H)),
        "pos_emb": nrm((MAX_POS, H)),
        "type_emb": nrm((TYPE_VOCAB, H)),
        "emb_ln_g": jnp.ones((1, H), jnp.float32),
        "emb_ln_b": jnp.zeros((1, H), jnp.float32),
        # per-layer weights stacked along a leading layer axis; Q/K/V fused along columns
        "qkv_w": nrm((L, H, 3 * H)),
        "qkv_b": nrm((L, 1, 3 * H)),
        "o_w": nrm((L, H, H)),
        "o_b": nrm((L, 1, H)),
        "attn_ln_g": jnp.ones((L, 1, H), jnp.float32),
        "attn_ln_b": jnp.zeros((L, 1, H), jnp.float32),
        "ff1_w": nrm((L, H, I)),
        "ff1_b": nrm((L, 1, I)),
        "ff2_w": nrm((L, I, H)),
        "ff2_b": nrm((L, 1, H)),
        "ffn_ln_g": jnp.ones((L, 1, H), jnp.float32),
        "ffn_ln_b": jnp.zeros((L, 1, H), jnp.float32),
    }


def roberta_forward(params, input_ids, mask):
    """ROBERTAEncoder.forward_single: returns (last_hidden_state, mask)."""
    b, s = input_ids.shape
    mask_f = mask.astype(jnp.float32)

    # RoBERTa position ids: padding_idx + cumulative count of non-pad tokens.
    # TODO(synk): no guard that position ids stay < MAX_POS for longer sequences.
    not_pad = (input_ids != PAD_ID).astype(jnp.int32)
    position_ids = jnp.cumsum(not_pad, axis=1) * not_pad + PAD_ID

    # Embedding gathers stay in plain JAX (table lookup has no clean Pallas tiling here).
    word = jnp.take(params["word_emb"], input_ids, axis=0)
    pos = jnp.take(params["pos_emb"], position_ids, axis=0)
    tok = jnp.take(params["type_emb"], jnp.zeros_like(input_ids), axis=0)
    emb = (word + pos + tok).reshape(b * s, HIDDEN)

    # extended attention mask: (1 - mask) * large negative, added to attention logits
    attn_bias = ((1.0 - mask_f) * -1e9).reshape(b, 1, s)

    h = encoder_fused(emb, attn_bias, params)
    last_hidden_state = h.reshape(b, s, HIDDEN)
    return last_hidden_state, mask


if __name__ == "__main__":
    key = jax.random.PRNGKey(0)
    pkey, dkey = jax.random.split(key)
    params = init_params(pkey)

    B, S = 2, 8
    input_ids = jax.random.randint(dkey, (B, S), 2, VOCAB, dtype=jnp.int32)
    input_ids = input_ids.at[1, -2:].set(PAD_ID)          # add some padding in batch 1
    mask = (input_ids != PAD_ID).astype(jnp.int32)

    fwd = jax.jit(roberta_forward)
    last_hidden, out_mask = fwd(params, input_ids, mask)
    jax.block_until_ready(last_hidden)
    jax.block_until_ready(out_mask)

    assert last_hidden.shape == (B, S, HIDDEN)
    assert out_mask.shape == (B, S)
    assert bool(jnp.all(jnp.isfinite(last_hidden)))
    print("KERNEL_OK")
</pallas_src>

<mosaic_0001>
module attributes {stable_mosaic.version = 11 : i64} {
  func.func @_encoder_kernel(%arg0: i32, %arg1: memref<16x32xf32, #tpu.memory_space<vmem>>, %arg2: memref<2x1x8xf32, #tpu.memory_space<vmem>>, %arg3: memref<1x32xf32, #tpu.memory_space<vmem>>, %arg4: memref<1x32xf32, #tpu.memory_space<vmem>>, %arg5: memref<1x32x96xf32, #tpu.memory_space<vmem>>, %arg6: memref<1x1x96xf32, #tpu.memory_space<vmem>>, %arg7: memref<1x32x32xf32, #tpu.memory_space<vmem>>, %arg8: memref<1x1x32xf32, #tpu.memory_space<vmem>>, %arg9: memref<1x1x32xf32, #tpu.memory_space<vmem>>, %arg10: memref<1x1x32xf32, #tpu.memory_space<vmem>>, %arg11: memref<1x32x64xf32, #tpu.memory_space<vmem>>, %arg12: memref<1x1x64xf32, #tpu.memory_space<vmem>>, %arg13: memref<1x64x32xf32, #tpu.memory_space<vmem>>, %arg14: memref<1x1x32xf32, #tpu.memory_space<vmem>>, %arg15: memref<1x1x32xf32, #tpu.memory_space<vmem>>, %arg16: memref<1x1x32xf32, #tpu.memory_space<vmem>>, %arg17: memref<16x32xf32, #tpu.memory_space<vmem>>) attributes {dimension_semantics = [#tpu.dimension_semantics<arbitrary>], iteration_bounds = array<i64: 2>, scalar_prefetch = 0 : i64, scratch_operands = 0 : i64, tpu.core_type = #tpu.core_type<tc>, window_params = [{pipeline_mode = #tpu.pipeline_mode<synchronous>, transform_indices = @transform_0, window_bounds = array<i64: 16, 32>}, {pipeline_mode = #tpu.pipeline_mode<synchronous>, transform_indices = @transform_1, window_bounds = array<i64: 2, 1, 8>}, {pipeline_mode = #tpu.pipeline_mode<synchronous>, transform_indices = @transform_2, window_bounds = array<i64: 1, 32>}, {pipeline_mode = #tpu.pipeline_mode<synchronous>, transform_indices = @transform_3, window_bounds = array<i64: 1, 32>}, {transform_indices = @transform_4, window_bounds = array<i64: 1, 32, 96>}, {transform_indices = @transform_5, window_bounds = array<i64: 1, 1, 96>}, {transform_indices = @transform_6, window_bounds = array<i64: 1, 32, 32>}, {transform_indices = @transform_7, window_bounds = array<i64: 1, 1, 32>}, {transform_indices = @transform_8, window_bounds = array<i64: 1, 1, 32>}, {transform_indices = @transform_9, window_bounds = array<i64: 1, 1, 32>}, {transform_indices = @transform_10, window_bounds = array<i64: 1, 32, 64>}, {transform_indices = @transform_11, window_bounds = array<i64: 1, 1, 64>}, {transform_indices = @transform_12, window_bounds = array<i64: 1, 64, 32>}, {transform_indices = @transform_13, window_bounds = array<i64: 1, 1, 32>}, {transform_indices = @transform_14, window_bounds = array<i64: 1, 1, 32>}, {transform_indices = @transform_15, window_bounds = array<i64: 1, 1, 32>}, {pipeline_mode = #tpu.pipeline_mode<synchronous>, transform_indices = @transform_16, window_bounds = array<i64: 16, 32>}]} {
    %c0_i32 = arith.constant 0 : i32
    %0 = arith.cmpi eq, %arg0, %c0_i32 : i32
    %1 = arith.extui %0 : i1 to i32
    %c0_i32_0 = arith.constant 0 : i32
    %2 = arith.cmpi ne, %1, %c0_i32_0 : i32
    scf.if %2 {
      %c0_83 = arith.constant 0 : index
      %c0_84 = arith.constant 0 : index
      %180 = vector.load %arg1[%c0_83, %c0_84] : memref<16x32xf32, #tpu.memory_space<vmem>>, vector<16x32xf32>
      %c0_85 = arith.constant 0 : index
      %c0_86 = arith.constant 0 : index
      %181 = vector.load %arg3[%c0_85, %c0_86] : memref<1x32xf32, #tpu.memory_space<vmem>>, vector<1x32xf32>
      %c0_87 = arith.constant 0 : index
      %c0_88 = arith.constant 0 : index
      %182 = vector.load %arg4[%c0_87, %c0_88] : memref<1x32xf32, #tpu.memory_space<vmem>>, vector<1x32xf32>
      %cst_89 = arith.constant dense<0.000000e+00> : vector<16xf32>
      %183 = vector.multi_reduction <add>, %180, %cst_89 [1] : vector<16x32xf32> to vector<16xf32>
      %184 = vector.shape_cast %183 : vector<16xf32> to vector<16x1xf32>
      %cst_90 = arith.constant 3.200000e+01 : f32
      %185 = vector.broadcast %cst_90 : f32 to vector<16x1xf32>
      %186 = arith.divf %184, %185 : vector<16x1xf32>
      %187 = vector.broadcast %186 : vector<16x1xf32> to vector<16x32xf32>
      %188 = arith.subf %180, %187 : vector<16x32xf32>
      %189 = arith.mulf %188, %188 : vector<16x32xf32>
      %cst_91 = arith.constant dense<0.000000e+00> : vector<16xf32>
      %190 = vector.multi_reduction <add>, %189, %cst_91 [1] : vector<16x32xf32> to vector<16xf32>
      %191 = vector.shape_cast %190 : vector<16xf32> to vector<16x1xf32>
      %cst_92 = arith.constant 3.200000e+01 : f32
      %192 = vector.broadcast %cst_92 : f32 to vector<16x1xf32>
      %193 = arith.divf %191, %192 : vector<16x1xf32>
      %194 = vector.broadcast %186 : vector<16x1xf32> to vector<16x32xf32>
      %195 = arith.subf %180, %194 : vector<16x32xf32>
      %cst_93 = arith.constant 9.99999974E-6 : f32
      %196 = vector.broadcast %cst_93 : f32 to vector<16x1xf32>
      %197 = arith.addf %193, %196 : vector<16x1xf32>
      %198 = math.rsqrt %197 : vector<16x1xf32>
      %199 = vector.broadcast %198 : vector<16x1xf32> to vector<16x32xf32>
      %200 = arith.mulf %195, %199 : vector<16x32xf32>
      %201 = vector.broadcast %181 : vector<1x32xf32> to vector<16x32xf32>
      %202 = arith.mulf %200, %201 : vector<16x32xf32>
      %203 = vector.broadcast %182 : vector<1x32xf32> to vector<16x32xf32>
      %204 = arith.addf %202, %203 : vector<16x32xf32>
      %c0_94 = arith.constant 0 : index
      %c0_95 = arith.constant 0 : index
      %205 = vector.load %arg17[%c0_94, %c0_95] : memref<16x32xf32, #tpu.memory_space<vmem>>, vector<16x32xf32>
      tpu.vector_store %arg17[%c0_94, %c0_95], %204 {strides = array<i32>} : memref<16x32xf32, #tpu.memory_space<vmem>>, vector<16x32xf32>,
    } else {
    }
    %c0 = arith.constant 0 : index
    %c0_1 = arith.constant 0 : index
    %3 = vector.load %arg17[%c0, %c0_1] : memref<16x32xf32, #tpu.memory_space<vmem>>, vector<16x32xf32>
    %c0_2 = arith.constant 0 : index
    %c0_3 = arith.constant 0 : index
    %c0_4 = arith.constant 0 : index
    %4 = vector.load %arg5[%c0_2, %c0_3, %c0_4] : memref<1x32x96xf32, #tpu.memory_space<vmem>>, vector<1x32x96xf32>
    %5 = vector.shape_cast %4 : vector<1x32x96xf32> to vector<32x96xf32>
    %cst = arith.constant dense<0.000000e+00> : vector<16x96xf32>
    %6 = tpu.matmul %3, %5, %cst {dimension_numbers = #tpu.dot_dimension_numbers<[1], [0], [0], [1], [0, 0, 1, 1], [], []>} : vector<16x32xf32>, vector<32x96xf32>, vector<16x96xf32> -> vector<16x96xf32>
    %c0_5 = arith.constant 0 : index
    %c0_6 = arith.constant 0 : index
    %c0_7 = arith.constant 0 : index
    %7 = vector.load %arg6[%c0_5, %c0_6, %c0_7] : memref<1x1x96xf32, #tpu.memory_space<vmem>>, vector<1x1x96xf32>
    %8 = vector.shape_cast %7 : vector<1x1x96xf32> to vector<1x96xf32>
    %9 = vector.broadcast %8 : vector<1x96xf32> to vector<16x96xf32>
    %10 = arith.addf %6, %9 : vector<16x96xf32>
    %11 = vector.extract_strided_slice %10 {offsets = [0, 0], sizes = [16, 32], strides = [1, 1]} : vector<16x96xf32> to vector<16x32xf32>
    %12 = vector.shape_cast %11 : vector<16x32xf32> to vector<2x8x32xf32>
    %13 = vector.extract_strided_slice %10 {offsets = [0, 32], sizes = [16, 32], strides = [1, 1]} : vector<16x96xf32> to vector<16x32xf32>
    %14 = vector.shape_cast %13 : vector<16x32xf32> to vector<2x8x32xf32>
    %15 = vector.extract_strided_slice %10 {offsets = [0, 64], sizes = [16, 32], strides = [1, 1]} : vector<16x96xf32> to vector<16x32xf32>
    %16 = vector.shape_cast %15 : vector<16x32xf32> to vector<2x8x32xf32>
    %c0_8 = arith.constant 0 : index
    %c0_9 = arith.constant 0 : index
    %c0_10 = arith.constant 0 : index
    %17 = vector.load %arg2[%c0_8, %c0_9, %c0_10] : memref<2x1x8xf32, #tpu.memory_space<vmem>>, vector<2x1x8xf32>
    %c0_11 = arith.constant 0 : index
    %c0_12 = arith.constant 0 : index
    %c0_13 = arith.constant 0 : index
    %18 = vector.load %arg7[%c0_11, %c0_12, %c0_13] : memref<1x32x32xf32, #tpu.memory_space<vmem>>, vector<1x32x32xf32>
    %19 = vector.shape_cast %18 : vector<1x32x32xf32> to vector<32x32xf32>
    %cst_14 = arith.constant 0.000000e+00 : f32
    %20 = vector.broadcast %cst_14 : f32 to vector<16x32xf32>
    %21 = vector.extract_strided_slice %12 {offsets = [0, 0, 0], sizes = [2, 8, 16], strides = [1, 1, 1]} : vector<2x8x32xf32> to vector<2x8x16xf32>
    %22 = vector.extract_strided_slice %14 {offsets = [0, 0, 0], sizes = [2, 8, 16], strides = [1, 1, 1]} : vector<2x8x32xf32> to vector<2x8x16xf32>
    %23 = vector.extract_strided_slice %16 {offsets = [0, 0, 0], sizes = [2, 8, 16], strides = [1, 1, 1]} : vector<2x8x32xf32> to vector<2x8x16xf32>
    %cst_15 = arith.constant dense<0.000000e+00> : vector<2x8x8xf32>
    %24 = tpu.matmul %21, %22, %cst_15 {dimension_numbers = #tpu.dot_dimension_numbers<[2], [2], [1], [1], [0, 0, 0, 1, 1, 1], [0], [0]>} : vector<2x8x16xf32>, vector<2x8x16xf32>, vector<2x8x8xf32> -> vector<2x8x8xf32>
    %cst_16 = arith.constant 2.500000e-01 : f32
    %25 = vector.broadcast %cst_16 : f32 to vector<2x8x8xf32>
    %26 = arith.mulf %24, %25 : vector<2x8x8xf32>
    %27 = vector.broadcast %17 : vector<2x1x8xf32> to vector<2x8x8xf32>
    %28 = arith.addf %26, %27 : vector<2x8x8xf32>
    %cst_17 = arith.constant dense<0xFF800000> : vector<2x8xf32>
    %29 = vector.multi_reduction <maximumf>, %28, %cst_17 [2] : vector<2x8x8xf32> to vector<2x8xf32>
    %30 = vector.shape_cast %29 : vector<2x8xf32> to vector<2x8x1xf32>
    %31 = vector.broadcast %30 : vector<2x8x1xf32> to vector<2x8x8xf32>
    %32 = arith.subf %28, %31 : vector<2x8x8xf32>
    %33 = math.exp %32 : vector<2x8x8xf32>
    %cst_18 = arith.constant dense<0.000000e+00> : vector<2x8xf32>
    %34 = vector.multi_reduction <add>, %33, %cst_18 [2] : vector<2x8x8xf32> to vector<2x8xf32>
    %35 = vector.shape_cast %34 : vector<2x8xf32> to vector<2x8x1xf32>
    %36 = tpu.reciprocal %35 {approx = true} : vector<2x8x1xf32> -> vector<2x8x1xf32>
    %37 = vector.broadcast %36 : vector<2x8x1xf32> to vector<2x8x8xf32>
    %38 = arith.mulf %33, %37 : vector<2x8x8xf32>
    %cst_19 = arith.constant dense<0.000000e+00> : vector<2x8x16xf32>
    %39 = tpu.matmul %38, %23, %cst_19 {dimension_numbers = #tpu.dot_dimension_numbers<[2], [1], [1], [2], [0, 0, 0, 1, 1, 2], [0], [0]>} : vector<2x8x8xf32>, vector<2x8x16xf32>, vector<2x8x16xf32> -> vector<2x8x16xf32>
    %40 = vector.shape_cast %39 : vector<2x8x16xf32> to vector<16x16xf32>
    %41 = vector.extract_strided_slice %19 {offsets = [0, 0], sizes = [16, 32], strides = [1, 1]} : vector<32x32xf32> to vector<16x32xf32>
    %cst_20 = arith.constant dense<0.000000e+00> : vector<16x32xf32>
    %42 = tpu.matmul %40, %41, %cst_20 {dimension_numbers = #tpu.dot_dimension_numbers<[1], [0], [0], [1], [0, 0, 1, 1], [], []>} : vector<16x16xf32>, vector<16x32xf32>, vector<16x32xf32> -> vector<16x32xf32>
    %43 = arith.addf %20, %42 : vector<16x32xf32>
    %44 = vector.extract_strided_slice %12 {offsets = [0, 0, 16], sizes = [2, 8, 16], strides = [1, 1, 1]} : vector<2x8x32xf32> to vector<2x8x16xf32>
    %45 = vector.extract_strided_slice %14 {offsets = [0, 0, 16], sizes = [2, 8, 16], strides = [1, 1, 1]} : vector<2x8x32xf32> to vector<2x8x16xf32>
    %46 = vector.extract_strided_slice %16 {offsets = [0, 0, 16], sizes = [2, 8, 16], strides = [1, 1, 1]} : vector<2x8x32xf32> to vector<2x8x16xf32>
    %cst_21 = arith.constant dense<0.000000e+00> : vector<2x8x8xf32>
    %47 = tpu.matmul %44, %45, %cst_21 {dimension_numbers = #tpu.dot_dimension_numbers<[2], [2], [1], [1], [0, 0, 0, 1, 1, 1], [0], [0]>} : vector<2x8x16xf32>, vector<2x8x16xf32>, vector<2x8x8xf32> -> vector<2x8x8xf32>
    %cst_22 = arith.constant 2.500000e-01 : f32
    %48 = vector.broadcast %cst_22 : f32 to vector<2x8x8xf32>
    %49 = arith.mulf %47, %48 : vector<2x8x8xf32>
    %50 = vector.broadcast %17 : vector<2x1x8xf32> to vector<2x8x8xf32>
    %51 = arith.addf %49, %50 : vector<2x8x8xf32>
    %cst_23 = arith.constant dense<0xFF800000> : vector<2x8xf32>
    %52 = vector.multi_reduction <maximumf>, %51, %cst_23 [2] : vector<2x8x8xf32> to vector<2x8xf32>
    %53 = vector.shape_cast %52 : vector<2x8xf32> to vector<2x8x1xf32>
    %54 = vector.broadcast %53 : vector<2x8x1xf32> to vector<2x8x8xf32>
    %55 = arith.subf %51, %54 : vector<2x8x8xf32>
    %56 = math.exp %55 : vector<2x8x8xf32>
    %cst_24 = arith.constant dense<0.000000e+00> : vector<2x8xf32>
    %57 = vector.multi_reduction <add>, %56, %cst_24 [2] : vector<2x8x8xf32> to vector<2x8xf32>
    %58 = vector.shape_cast %57 : vector<2x8xf32> to vector<2x8x1xf32>
    %59 = tpu.reciprocal %58 {approx = true} : vector<2x8x1xf32> -> vector<2x8x1xf32>
    %60 = vector.broadcast %59 : vector<2x8x1xf32> to vector<2x8x8xf32>
    %61 = arith.mulf %56, %60 : vector<2x8x8xf32>
    %cst_25 = arith.constant dense<0.000000e+00> : vector<2x8x16xf32>
    %62 = tpu.matmul %61, %46, %cst_25 {dimension_numbers = #tpu.dot_dimension_numbers<[2], [1], [1], [2], [0, 0, 0, 1, 1, 2], [0], [0]>} : vector<2x8x8xf32>, vector<2x8x16xf32>, vector<2x8x16xf32> -> vector<2x8x16xf32>
    %63 = vector.shape_cast %62 : vector<2x8x16xf32> to vector<16x16xf32>
    %64 = vector.extract_strided_slice %19 {offsets = [16, 0], sizes = [16, 32], strides = [1, 1]} : vector<32x32xf32> to vector<16x32xf32>
    %cst_26 = arith.constant dense<0.000000e+00> : vector<16x32xf32>
    %65 = tpu.matmul %63, %64, %cst_26 {dimension_numbers = #tpu.dot_dimension_numbers<[1], [0], [0], [1], [0, 0, 1, 1], [], []>} : vector<16x16xf32>, vector<16x32xf32>, vector<16x32xf32> -> vector<16x32xf32>
    %66 = arith.addf %43, %65 : vector<16x32xf32>
    %c0_27 = arith.constant 0 : index
    %c0_28 = arith.constant 0 : index
    %c0_29 = arith.constant 0 : index
    %67 = vector.load %arg8[%c0_27, %c0_28, %c0_29] : memref<1x1x32xf32, #tpu.memory_space<vmem>>, vector<1x1x32xf32>
    %68 = vector.shape_cast %67 : vector<1x1x32xf32> to vector<1x32xf32>
    %69 = vector.broadcast %68 : vector<1x32xf32> to vector<16x32xf32>
    %70 = arith.addf %66, %69 : vector<16x32xf32>
    %71 = arith.addf %70, %3 : vector<16x32xf32>
    %c0_30 = arith.constant 0 : index
    %c0_31 = arith.constant 0 : index
    %c0_32 = arith.constant 0 : index
    %72 = vector.load %arg9[%c0_30, %c0_31, %c0_32] : memref<1x1x32xf32, #tpu.memory_space<vmem>>, vector<1x1x32xf32>
    %73 = vector.shape_cast %72 : vector<1x1x32xf32> to vector<1x32xf32>
    %c0_33 = arith.constant 0 : index
    %c0_34 = arith.constant 0 : index
    %c0_35 = arith.constant 0 : index
    %74 = vector.load %arg10[%c0_33, %c0_34, %c0_35] : memref<1x1x32xf32, #tpu.memory_space<vmem>>, vector<1x1x32xf32>
    %75 = vector.shape_cast %74 : vector<1x1x32xf32> to vector<1x32xf32>
    %cst_36 = arith.constant dense<0.000000e+00> : vector<16xf32>
    %76 = vector.multi_reduction <add>, %71, %cst_36 [1] : vector<16x32xf32> to vector<16xf32>
    %77 = vector.shape_cast %76 : vector<16xf32> to vector<16x1xf32>
    %cst_37 = arith.constant 3.200000e+01 : f32
    %78 = vector.broadcast %cst_37 : f32 to vector<16x1xf32>
    %79 = arith.divf %77, %78 : vector<16x1xf32>
    %80 = vector.broadcast %79 : vector<16x1xf32> to vector<16x32xf32>
    %81 = arith.subf %71, %80 : vector<16x32xf32>
    %82 = arith.mulf %81, %81 : vector<16x32xf32>
    %cst_38 = arith.constant dense<0.000000e+00> : vector<16xf32>
    %83 = vector.multi_reduction <add>, %82, %cst_38 [1] : vector<16x32xf32> to vector<16xf32>
    %84 = vector.shape_cast %83 : vector<16xf32> to vector<16x1xf32>
    %cst_39 = arith.constant 3.200000e+01 : f32
    %85 = vector.broadcast %cst_39 : f32 to vector<16x1xf32>
    %86 = arith.divf %84, %85 : vector<16x1xf32>
    %87 = vector.broadcast %79 : vector<16x1xf32> to vector<16x32xf32>
    %88 = arith.subf %71, %87 : vector<16x32xf32>
    %cst_40 = arith.constant 9.99999974E-6 : f32
    %89 = vector.broadcast %cst_40 : f32 to vector<16x1xf32>
    %90 = arith.addf %86, %89 : vector<16x1xf32>
    %91 = math.rsqrt %90 : vector<16x1xf32>
    %92 = vector.broadcast %91 : vector<16x1xf32> to vector<16x32xf32>
    %93 = arith.mulf %88, %92 : vector<16x32xf32>
    %94 = vector.broadcast %73 : vector<1x32xf32> to vector<16x32xf32>
    %95 = arith.mulf %93, %94 : vector<16x32xf32>
    %96 = vector.broadcast %75 : vector<1x32xf32> to vector<16x32xf32>
    %97 = arith.addf %95, %96 : vector<16x32xf32>
    %c0_41 = arith.constant 0 : index
    %c0_42 = arith.constant 0 : index
    %c0_43 = arith.constant 0 : index
    %98 = vector.load %arg11[%c0_41, %c0_42, %c0_43] : memref<1x32x64xf32, #tpu.memory_space<vmem>>, vector<1x32x64xf32>
    %99 = vector.shape_cast %98 : vector<1x32x64xf32> to vector<32x64xf32>
    %cst_44 = arith.constant dense<0.000000e+00> : vector<16x64xf32>
    %100 = tpu.matmul %97, %99, %cst_44 {dimension_numbers = #tpu.dot_dimension_numbers<[1], [0], [0], [1], [0, 0, 1, 1], [], []>} : vector<16x32xf32>, vector<32x64xf32>, vector<16x64xf32> -> vector<16x64xf32>
    %c0_45 = arith.constant 0 : index
    %c0_46 = arith.constant 0 : index
    %c0_47 = arith.constant 0 : index
    %101 = vector.load %arg12[%c0_45, %c0_46, %c0_47] : memref<1x1x64xf32, #tpu.memory_space<vmem>>, vector<1x1x64xf32>
    %102 = vector.shape_cast %101 : vector<1x1x64xf32> to vector<1x64xf32>
    %103 = vector.broadcast %102 : vector<1x64xf32> to vector<16x64xf32>
    %104 = arith.addf %100, %103 : vector<16x64xf32>
    %cst_48 = arith.constant 5.000000e-01 : f32
    %105 = vector.broadcast %cst_48 : f32 to vector<16x64xf32>
    %106 = arith.mulf %105, %104 : vector<16x64xf32>
    %cst_49 = arith.constant 0.707106769 : f32
    %107 = vector.broadcast %cst_49 : f32 to vector<16x64xf32>
    %108 = arith.mulf %104, %107 : vector<16x64xf32>
    %109 = math.absf %108 : vector<16x64xf32>
    %cst_50 = arith.constant 0.327591091 : f32
    %110 = vector.broadcast %cst_50 : f32 to vector<16x64xf32>
    %111 = arith.mulf %110, %109 : vector<16x64xf32>
    %cst_51 = arith.constant 1.000000e+00 : f32
    %112 = vector.broadcast %cst_51 : f32 to vector<16x64xf32>
    %113 = arith.addf %112, %111 : vector<16x64xf32>
    %cst_52 = arith.constant 1.000000e+00 : f32
    %114 = vector.broadcast %cst_52 : f32 to vector<16x64xf32>
    %115 = arith.divf %114, %113 : vector<16x64xf32>
    %cst_53 = arith.constant 1.06140542 : f32
    %116 = vector.broadcast %cst_53 : f32 to vector<16x64xf32>
    %117 = arith.mulf %115, %116 : vector<16x64xf32>
    %cst_54 = arith.constant -1.45315206 : f32
    %118 = vector.broadcast %cst_54 : f32 to vector<16x64xf32>
    %119 = arith.addf %118, %117 : vector<16x64xf32>
    %120 = arith.mulf %115, %119 : vector<16x64xf32>
    %cst_55 = arith.constant 1.42141378 : f32
    %121 = vector.broadcast %cst_55 : f32 to vector<16x64xf32>
    %122 = arith.addf %121, %120 : vector<16x64xf32>
    %123 = arith.mulf %115, %122 : vector<16x64xf32>
    %cst_56 = arith.constant -0.284496725 : f32
    %124 = vector.broadcast %cst_56 : f32 to vector<16x64xf32>
    %125 = arith.addf %124, %123 : vector<16x64xf32>
    %126 = arith.mulf %115, %125 : vector<16x64xf32>
    %cst_57 = arith.constant 0.254829586 : f32
    %127 = vector.broadcast %cst_57 : f32 to vector<16x64xf32>
    %128 = arith.addf %127, %126 : vector<16x64xf32>
    %129 = arith.mulf %115, %128 : vector<16x64xf32>
    %cst_58 = arith.constant 0.000000e+00 : f32
    %130 = vector.broadcast %cst_58 : f32 to vector<16x64xf32>
    %131 = arith.subf %130, %109 : vector<16x64xf32>
    %132 = arith.mulf %131, %109 : vector<16x64xf32>
    %133 = math.exp %132 : vector<16x64xf32>
    %134 = arith.mulf %129, %133 : vector<16x64xf32>
    %cst_59 = arith.constant 1.000000e+00 : f32
    %135 = vector.broadcast %cst_59 : f32 to vector<16x64xf32>
    %136 = arith.subf %135, %134 : vector<16x64xf32>
    %cst_60 = arith.constant 0.000000e+00 : f32
    %137 = vector.broadcast %cst_60 : f32 to vector<16x64xf32>
    %138 = arith.cmpf olt, %108, %137 : vector<16x64xf32>
    %cst_61 = arith.constant 0.000000e+00 : f32
    %139 = vector.broadcast %cst_61 : f32 to vector<16x64xf32>
    %140 = arith.subf %139, %136 : vector<16x64xf32>
    %141 = arith.select %138, %140, %136 : vector<16x64xi1>, vector<16x64xf32>
    %cst_62 = arith.constant 1.000000e+00 : f32
    %142 = vector.broadcast %cst_62 : f32 to vector<16x64xf32>
    %143 = arith.addf %142, %141 : vector<16x64xf32>
    %144 = arith.mulf %106, %143 : vector<16x64xf32>
    %c0_63 = arith.constant 0 : index
    %c0_64 = arith.constant 0 : index
    %c0_65 = arith.constant 0 : index
    %145 = vector.load %arg13[%c0_63, %c0_64, %c0_65] : memref<1x64x32xf32, #tpu.memory_space<vmem>>, vector<1x64x32xf32>
    %146 = vector.shape_cast %145 : vector<1x64x32xf32> to vector<64x32xf32>
    %cst_66 = arith.constant dense<0.000000e+00> : vector<16x32xf32>
    %147 = tpu.matmul %144, %146, %cst_66 {dimension_numbers = #tpu.dot_dimension_numbers<[1], [0], [0], [1], [0, 0, 1, 1], [], []>} : vector<16x64xf32>, vector<64x32xf32>, vector<16x32xf32> -> vector<16x32xf32>
    %c0_67 = arith.constant 0 : index
    %c0_68 = arith.constant 0 : index
    %c0_69 = arith.constant 0 : index
    %148 = vector.load %arg14[%c0_67, %c0_68, %c0_69] : memref<1x1x32xf32, #tpu.memory_space<vmem>>, vector<1x1x32xf32>
    %149 = vector.shape_cast %148 : vector<1x1x32xf32> to vector<1x32xf32>
    %150 = vector.broadcast %149 : vector<1x32xf32> to vector<16x32xf32>
    %151 = arith.addf %147, %150 : vector<16x32xf32>
    %152 = arith.addf %151, %97 : vector<16x32xf32>
    %c0_70 = arith.constant 0 : index
    %c0_71 = arith.constant 0 : index
    %c0_72 = arith.constant 0 : index
    %153 = vector.load %arg15[%c0_70, %c0_71, %c0_72] : memref<1x1x32xf32, #tpu.memory_space<vmem>>, vector<1x1x32xf32>
    %154 = vector.shape_cast %153 : vector<1x1x32xf32> to vector<1x32xf32>
    %c0_73 = arith.constant 0 : index
    %c0_74 = arith.constant 0 : index
    %c0_75 = arith.constant 0 : index
    %155 = vector.load %arg16[%c0_73, %c0_74, %c0_75] : memref<1x1x32xf32, #tpu.memory_space<vmem>>, vector<1x1x32xf32>
    %156 = vector.shape_cast %155 : vector<1x1x32xf32> to vector<1x32xf32>
    %cst_76 = arith.constant dense<0.000000e+00> : vector<16xf32>
    %157 = vector.multi_reduction <add>, %152, %cst_76 [1] : vector<16x32xf32> to vector<16xf32>
    %158 = vector.shape_cast %157 : vector<16xf32> to vector<16x1xf32>
    %cst_77 = arith.constant 3.200000e+01 : f32
    %159 = vector.broadcast %cst_77 : f32 to vector<16x1xf32>
    %160 = arith.divf %158, %159 : vector<16x1xf32>
    %161 = vector.broadcast %160 : vector<16x1xf32> to vector<16x32xf32>
    %162 = arith.subf %152, %161 : vector<16x32xf32>
    %163 = arith.mulf %162, %162 : vector<16x32xf32>
    %cst_78 = arith.constant dense<0.000000e+00> : vector<16xf32>
    %164 = vector.multi_reduction <add>, %163, %cst_78 [1] : vector<16x32xf32> to vector<16xf32>
    %165 = vector.shape_cast %164 : vector<16xf32> to vector<16x1xf32>
    %cst_79 = arith.constant 3.200000e+01 : f32
    %166 = vector.broadcast %cst_79 : f32 to vector<16x1xf32>
    %167 = arith.divf %165, %166 : vector<16x1xf32>
    %168 = vector.broadcast %160 : vector<16x1xf32> to vector<16x32xf32>
    %169 = arith.subf %152, %168 : vector<16x32xf32>
    %cst_80 = arith.constant 9.99999974E-6 : f32
    %170 = vector.broadcast %cst_80 : f32 to vector<16x1xf32>
    %171 = arith.addf %167, %170 : vector<16x1xf32>
    %172 = math.rsqrt %171 : vector<16x1xf32>
    %173 = vector.broadcast %172 : vector<16x1xf32> to vector<16x32xf32>
    %174 = arith.mulf %169, %173 : vector<16x32xf32>
    %175 = vector.broadcast %154 : vector<1x32xf32> to vector<16x32xf32>
    %176 = arith.mulf %174, %175 : vector<16x32xf32>
    %177 = vector.broadcast %156 : vector<1x32xf32> to vector<16x32xf32>
    %178 = arith.addf %176, %177 : vector<16x32xf32>
    %c0_81 = arith.constant 0 : index
    %c0_82 = arith.constant 0 : index
    %179 = vector.load %arg17[%c0_81, %c0_82] : memref<16x32xf32, #tpu.memory_space<vmem>>, vector<16x32xf32>
    tpu.vector_store %arg17[%c0_81, %c0_82], %178 {strides = array<i32>} : memref<16x32xf32, #tpu.memory_space<vmem>>, vector<16x32xf32>,
    return
  }
  func.func @transform_0(%arg0: i32) -> (i32, i32) {
    %c0_i32 = arith.constant 0 : i32
    %c0_i32_0 = arith.constant 0 : i32
    %c0_i32_1 = arith.constant 0 : i32
    return %c0_i32, %c0_i32_0 : i32, i32
  }
  func.func @transform_1(%arg0: i32) -> (i32, i32, i32) {
    %c0_i32 = arith.constant 0 : i32
    %c0_i32_0 = arith.constant 0 : i32
    %c0_i32_1 = arith.constant 0 : i32
    %c0_i32_2 = arith.constant 0 : i32
    return %c0_i32, %c0_i32_0, %c0_i32_1 : i32, i32, i32
  }
  func.func @transform_2(%arg0: i32) -> (i32, i32) {
    %c0_i32 = arith.constant 0 : i32
    %c0_i32_0 = arith.constant 0 : i32
    %c0_i32_1 = arith.constant 0 : i32
    return %c0_i32, %c0_i32_0 : i32, i32
  }
  func.func @transform_3(%arg0: i32) -> (i32, i32) {
    %c0_i32 = arith.constant 0 : i32
    %c0_i32_0 = arith.constant 0 : i32
    %c0_i32_1 = arith.constant 0 : i32
    return %c0_i32, %c0_i32_0 : i32, i32
  }
  func.func @transform_4(%arg0: i32) -> (i32, i32, i32) {
    %c0_i32 = arith.constant 0 : i32
    %c0_i32_0 = arith.constant 0 : i32
    %c0_i32_1 = arith.constant 0 : i32
    return %arg0, %c0_i32, %c0_i32_0 : i32, i32, i32
  }
  func.func @transform_5(%arg0: i32) -> (i32, i32, i32) {
    %c0_i32 = arith.constant 0 : i32
    %c0_i32_0 = arith.constant 0 : i32
    %c0_i32_1 = arith.constant 0 : i32
    return %arg0, %c0_i32, %c0_i32_0 : i32, i32, i32
  }
  func.func @transform_6(%arg0: i32) -> (i32, i32, i32) {
    %c0_i32 = arith.constant 0 : i32
    %c0_i32_0 = arith.constant 0 : i32
    %c0_i32_1 = arith.constant 0 : i32
    return %arg0, %c0_i32, %c0_i32_0 : i32, i32, i32
  }
  func.func @transform_7(%arg0: i32) -> (i32, i32, i32) {
    %c0_i32 = arith.constant 0 : i32
    %c0_i32_0 = arith.constant 0 : i32
    %c0_i32_1 = arith.constant 0 : i32
    return %arg0, %c0_i32, %c0_i32_0 : i32, i32, i32
  }
  func.func @transform_8(%arg0: i32) -> (i32, i32, i32) {
    %c0_i32 = arith.constant 0 : i32
    %c0_i32_0 = arith.constant 0 : i32
    %c0_i32_1 = arith.constant 0 : i32
    return %arg0, %c0_i32, %c0_i32_0 : i32, i32, i32
  }
  func.func @transform_9(%arg0: i32) -> (i32, i32, i32) {
    %c0_i32 = arith.constant 0 : i32
    %c0_i32_0 = arith.constant 0 : i32
    %c0_i32_1 = arith.constant 0 : i32
    return %arg0, %c0_i32, %c0_i32_0 : i32, i32, i32
  }
  func.func @transform_10(%arg0: i32) -> (i32, i32, i32) {
    %c0_i32 = arith.constant 0 : i32
    %c0_i32_0 = arith.constant 0 : i32
    %c0_i32_1 = arith.constant 0 : i32
    return %arg0, %c0_i32, %c0_i32_0 : i32, i32, i32
  }
  func.func @transform_11(%arg0: i32) -> (i32, i32, i32) {
    %c0_i32 = arith.constant 0 : i32
    %c0_i32_0 = arith.constant 0 : i32
    %c0_i32_1 = arith.constant 0 : i32
    return %arg0, %c0_i32, %c0_i32_0 : i32, i32, i32
  }
  func.func @transform_12(%arg0: i32) -> (i32, i32, i32) {
    %c0_i32 = arith.constant 0 : i32
    %c0_i32_0 = arith.constant 0 : i32
    %c0_i32_1 = arith.constant 0 : i32
    return %arg0, %c0_i32, %c0_i32_0 : i32, i32, i32
  }
  func.func @transform_13(%arg0: i32) -> (i32, i32, i32) {
    %c0_i32 = arith.constant 0 : i32
    %c0_i32_0 = arith.constant 0 : i32
    %c0_i32_1 = arith.constant 0 : i32
    return %arg0, %c0_i32, %c0_i32_0 : i32, i32, i32
  }
  func.func @transform_14(%arg0: i32) -> (i32, i32, i32) {
    %c0_i32 = arith.constant 0 : i32
    %c0_i32_0 = arith.constant 0 : i32
    %c0_i32_1 = arith.constant 0 : i32
    return %arg0, %c0_i32, %c0_i32_0 : i32, i32, i32
  }
  func.func @transform_15(%arg0: i32) -> (i32, i32, i32) {
    %c0_i32 = arith.constant 0 : i32
    %c0_i32_0 = arith.constant 0 : i32
    %c0_i32_1 = arith.constant 0 : i32
    return %arg0, %c0_i32, %c0_i32_0 : i32, i32, i32
  }
  func.func @transform_16(%arg0: i32) -> (i32, i32) {
    %c0_i32 = arith.constant 0 : i32
    %c0_i32_0 = arith.constant 0 : i32
    %c0_i32_1 = arith.constant 0 : i32
    return %c0_i32, %c0_i32_0 : i32, i32
  }
}

</mosaic_0001>

<llo_original>
// kernel: roberta_forward.1
$region0: #{roberta_forward.1}
  #allocation0 [shape = 'u32[]', space=smem, size = 0x4, offset = 0x4, fixed_abs, tag = 'smem constant byte address 0x4 - core index']
  #allocation1 [shape = 'u32[144,128]{1,0:T(1,128)}', space=vmem, size = 0x12000, scoped, tag = 'internal scratch']
  %s0 = inlined_call_operand.vmem [shape: f32[16,32], index: 0, kind: input, shape index: {}]
  %s1 = inlined_call_operand.vmem [shape: f32[2,1,8], index: 1, kind: input, shape index: {}]
  %s2 = inlined_call_operand.vmem [shape: f32[1,32], index: 2, kind: input, shape index: {}]
  %s3 = inlined_call_operand.vmem [shape: f32[1,32], index: 3, kind: input, shape index: {}]
  %s4 = inlined_call_operand.vmem [shape: f32[2,32,96], index: 4, kind: input, shape index: {}]
  %s5 = inlined_call_operand.vmem [shape: f32[2,1,96], index: 5, kind: input, shape index: {}]
  %s6 = inlined_call_operand.vmem [shape: f32[2,32,32], index: 6, kind: input, shape index: {}]
  %s7 = inlined_call_operand.vmem [shape: f32[2,1,32], index: 7, kind: input, shape index: {}]
  %s8 = inlined_call_operand.vmem [shape: f32[2,1,32], index: 8, kind: input, shape index: {}]
  %s9 = inlined_call_operand.vmem [shape: f32[2,1,32], index: 9, kind: input, shape index: {}]
  %s10 = inlined_call_operand.vmem [shape: f32[2,32,64], index: 10, kind: input, shape index: {}]
  %s11 = inlined_call_operand.vmem [shape: f32[2,1,64], index: 11, kind: input, shape index: {}]
  %s12 = inlined_call_operand.vmem [shape: f32[2,64,32], index: 12, kind: input, shape index: {}]
  %s13 = inlined_call_operand.vmem [shape: f32[2,1,32], index: 13, kind: input, shape index: {}]
  %s14 = inlined_call_operand.vmem [shape: f32[2,1,32], index: 14, kind: input, shape index: {}]
  %s15 = inlined_call_operand.vmem [shape: f32[2,1,32], index: 15, kind: input, shape index: {}]
  %s16 = inlined_call_operand.hbm [shape: f32[16,32], index: 16, kind: output, shape index: {}]
  %s17 = sld [smem:[#allocation0]]
  $region101: #{roberta_forward.1} parent=0
    _
  %s19 = ssub.s32 1, %s17
  %s20 = scalar_select 0, %s19, %s17
  $region1: #{roberta_forward.1} parent=0
    #allocation2 [shape = 'u8[8192]{0}', space=vmem, size = 0x2000, scoped, tag = 'output window, operand 0, single buffered']
    #allocation3 [shape = 's32[2]{0}', space=sflag, size = 0x8, scoped, tag = 'scoped memory for roberta_forward.1']
    %21 = vsyncpa [#allocation3], 0
    loop: start=0, step=1, limit=4
    $region2: #{roberta_forward.1} parent=1 // loop_pre_header
      _
    $region3: #{roberta_forward.1} parent=1 // loop_header
      %s23 = sphi 0, %s27
      %p24 = scmp.ge.s32.totalorder %s23, 4
      %s31 = sphi 0, %s31
      %s33 = sphi 0, %s31
      %s34 = sphi 0, %s33
      %s48 = sphi 0, %s34
      %s52 = sphi 0, %s52
      %s54 = sphi 0, %s52
      %s55 = sphi 0, %s54
      %s69 = sphi 0, %s55
      %s73 = sphi 0, %s73
      %s75 = sphi 0, %s73
      %s76 = sphi 0, %s75
      %s90 = sphi 0, %s76
      %s94 = sphi 0, %s94
      %s96 = sphi 0, %s94
      %s97 = sphi 0, %s96
      %s111 = sphi 0, %s97
      %s117 = sphi 0, %s119
      %s120 = sphi 0, %s117
      %s121 = sphi 0, %s120
      %s137 = sphi 0, %s121
      %s143 = sphi 0, %s145
      %s146 = sphi 0, %s143
      %s147 = sphi 0, %s146
      %s163 = sphi 0, %s147
      %s169 = sphi 0, %s171
      %s172 = sphi 0, %s169
      %s173 = sphi 0, %s172
      %s189 = sphi 0, %s173
      %s195 = sphi 0, %s197
      %s198 = sphi 0, %s195
      %s199 = sphi 0, %s198
      %s215 = sphi 0, %s199
      %s221 = sphi 0, %s223
      %s224 = sphi 0, %s221
      %s225 = sphi 0, %s224
      %s241 = sphi 0, %s225
      %s247 = sphi 0, %s249
      %s250 = sphi 0, %s247
      %s251 = sphi 0, %s250
      %s267 = sphi 0, %s251
      %s273 = sphi 0, %s275
      %s276 = sphi 0, %s273
      %s277 = sphi 0, %s276
      %s293 = sphi 0, %s277
      %s299 = sphi 0, %s301
      %s302 = sphi 0, %s299
      %s303 = sphi 0, %s302
      %s319 = sphi 0, %s303
      %s325 = sphi 0, %s327
      %s328 = sphi 0, %s325
      %s329 = sphi 0, %s328
      %s345 = sphi 0, %s329
      %s351 = sphi 0, %s353
      %s354 = sphi 0, %s351
      %s355 = sphi 0, %s354
      %s371 = sphi 0, %s355
      %s377 = sphi 0, %s379
      %s380 = sphi 0, %s377
      %s381 = sphi 0, %s380
      %s397 = sphi 0, %s381
      %s403 = sphi 0, %s405
      %s406 = sphi 0, %s403
      %s407 = sphi 0, %s406
      %s423 = sphi 0, %s407
      %s427 = sphi 0, %s427
      %s429 = sphi 0, %s427
      %s430 = sphi 0, %s429
      %s444 = sphi 0, %s430
    $region4: #{roberta_forward.1} parent=1 // loop_header_branch
      %26 = sbr.rel (%p24) target = $region8
    $region5: #{roberta_forward.1} parent=1 // loop_body
      %s28 = ssub.s32 %s23, 1
      %s29 = ssub.s32 %s23, 2
      %s30 = sadd.s32 %s23, 1
      %s32 = sadd.s32 %s31, 1
      %p35 = scmp.eq.s32.totalorder %s23, 1
      %p36 = scmp.ne.s32.totalorder %s31, %s33
      %p37 = scmp.eq.s32.totalorder %s23, 0
      %p38 = por %p36, %p37
      %p39 = scmp.ne.s32.totalorder %s31, %s33
      %p40 = scmp.eq.s32.totalorder %s28, 1
      %p41 = por %p39, %p40
      %p42 = scmp.ne.s32.totalorder %s33, %s34
      %p43 = scmp.eq.s32.totalorder %s28, 0
      %p44 = por %p42, %p43
      %p45 = scmp.ne.s32.totalorder %s33, %s34
      %p46 = scmp.eq.s32.totalorder %s29, 1
      %p47 = por %p45, %p46
      %p49 = scmp.ne.s32.totalorder %s34, %s48
      %p50 = scmp.eq.s32.totalorder %s29, 0
      %p51 = por %p49, %p50
      %s53 = sadd.s32 %s52, 1
      %p56 = scmp.eq.s32.totalorder %s23, 1
      %p57 = scmp.ne.s32.totalorder %s52, %s54
      %p58 = scmp.eq.s32.totalorder %s23, 0
      %p59 = por %p57, %p58
      %p60 = scmp.ne.s32.totalorder %s52, %s54
      %p61 = scmp.eq.s32.totalorder %s28, 1
      %p62 = por %p60, %p61
      %p63 = scmp.ne.s32.totalorder %s54, %s55
      %p64 = scmp.eq.s32.totalorder %s28, 0
      %p65 = por %p63, %p64
      %p66 = scmp.ne.s32.totalorder %s54, %s55
      %p67 = scmp.eq.s32.totalorder %s29, 1
      %p68 = por %p66, %p67
      %p70 = scmp.ne.s32.totalorder %s55, %s69
      %p71 = scmp.eq.s32.totalorder %s29, 0
      %p72 = por %p70, %p71
      %s74 = sadd.s32 %s73, 1
      %p77 = scmp.eq.s32.totalorder %s23, 1
      %p78 = scmp.ne.s32.totalorder %s73, %s75
      %p79 = scmp.eq.s32.totalorder %s23, 0
      %p80 = por %p78, %p79
      %p81 = scmp.ne.s32.totalorder %s73, %s75
      %p82 = scmp.eq.s32.totalorder %s28, 1
      %p83 = por %p81, %p82
      %p84 = scmp.ne.s32.totalorder %s75, %s76
      %p85 = scmp.eq.s32.totalorder %s28, 0
      %p86 = por %p84, %p85
      %p87 = scmp.ne.s32.totalorder %s75, %s76
      %p88 = scmp.eq.s32.totalorder %s29, 1
      %p89 = por %p87, %p88
      %p91 = scmp.ne.s32.totalorder %s76, %s90
      %p92 = scmp.eq.s32.totalorder %s29, 0
      %p93 = por %p91, %p92
      %s95 = sadd.s32 %s94, 1
      %p98 = scmp.eq.s32.totalorder %s23, 1
      %p99 = scmp.ne.s32.totalorder %s94, %s96
      %p100 = scmp.eq.s32.totalorder %s23, 0
      %p101 = por %p99, %p100
      %p102 = scmp.ne.s32.totalorder %s94, %s96
      %p103 = scmp.eq.s32.totalorder %s28, 1
      %p104 = por %p102, %p103
      %p105 = scmp.ne.s32.totalorder %s96, %s97
      %p106 = scmp.eq.s32.totalorder %s28, 0
      %p107 = por %p105, %p106
      %p108 = scmp.ne.s32.totalorder %s96, %s97
      %p109 = scmp.eq.s32.totalorder %s29, 1
      %p110 = por %p108, %p109
      %p112 = scmp.ne.s32.totalorder %s97, %s111
      %p113 = scmp.eq.s32.totalorder %s29, 0
      %p114 = por %p112, %p113
      %s115 = ssub.s32 %s23, %s30
      %p116 = scmp.eq.s32.totalorder %s115, 0
      %s118 = sadd.s32 %s117, 1
      %s119 = scalar_select %p116, %s117, %s118
      %p122 = pneg %p116
      %p123 = scmp.eq.s32.totalorder %s23, 1
      %p124 = por %p122, %p123
      %p125 = scmp.ne.s32.totalorder %s117, %s120
      %p126 = scmp.eq.s32.totalorder %s23, 0
      %p127 = por %p125, %p126
      %p128 = scmp.ne.s32.totalorder %s117, %s120
      %p129 = scmp.eq.s32.totalorder %s28, 1
      %p130 = por %p128, %p129
      %p131 = scmp.ne.s32.totalorder %s120, %s121
      %p132 = scmp.eq.s32.totalorder %s28, 0
      %p133 = por %p131, %p132
      %p134 = scmp.ne.s32.totalorder %s120, %s121
      %p135 = scmp.eq.s32.totalorder %s29, 1
      %p136 = por %p134, %p135
      %p138 = scmp.ne.s32.totalorder %s121, %s137
      %p139 = scmp.eq.s32.totalorder %s29, 0
      %p140 = por %p138, %p139
      %s141 = ssub.s32 %s23, %s30
      %p142 = scmp.eq.s32.totalorder %s141, 0
      %s144 = sadd.s32 %s143, 1
      %s145 = scalar_select %p142, %s143, %s144
      %p148 = pneg %p142
      %p149 = scmp.eq.s32.totalorder %s23, 1
      %p150 = por %p148, %p149
      %p151 = scmp.ne.s32.totalorder %s143, %s146
      %p152 = scmp.eq.s32.totalorder %s23, 0
      %p153 = por %p151, %p152
      %p154 = scmp.ne.s32.totalorder %s143, %s146
      %p155 = scmp.eq.s32.totalorder %s28, 1
      %p156 = por %p154, %p155
      %p157 = scmp.ne.s32.totalorder %s146, %s147
      %p158 = scmp.eq.s32.totalorder %s28, 0
      %p159 = por %p157, %p158
      %p160 = scmp.ne.s32.totalorder %s146, %s147
      %p161 = scmp.eq.s32.totalorder %s29, 1
      %p162 = por %p160, %p161
      %p164 = scmp.ne.s32.totalorder %s147, %s163
      %p165 = scmp.eq.s32.totalorder %s29, 0
      %p166 = por %p164, %p165
      %s167 = ssub.s32 %s23, %s30
      %p168 = scmp.eq.s32.totalorder %s167, 0
      %s170 = sadd.s32 %s169, 1
      %s171 = scalar_select %p168, %s169, %s170
      %p174 = pneg %p168
      %p175 = scmp.eq.s32.totalorder %s23, 1
      %p176 = por %p174, %p175
      %p177 = scmp.ne.s32.totalorder %s169, %s172
      %p178 = scmp.eq.s32.totalorder %s23, 0
      %p179 = por %p177, %p178
      %p180 = scmp.ne.s32.totalorder %s169, %s172
      %p181 = scmp.eq.s32.totalorder %s28, 1
      %p182 = por %p180, %p181
      %p183 = scmp.ne.s32.totalorder %s172, %s173
      %p184 = scmp.eq.s32.totalorder %s28, 0
      %p185 = por %p183, %p184
      %p186 = scmp.ne.s32.totalorder %s172, %s173
      %p187 = scmp.eq.s32.totalorder %s29, 1
      %p188 = por %p186, %p187
      %p190 = scmp.ne.s32.totalorder %s173, %s189
      %p191 = scmp.eq.s32.totalorder %s29, 0
      %p192 = por %p190, %p191
      %s193 = ssub.s32 %s23, %s30
      %p194 = scmp.eq.s32.totalorder %s193, 0
      %s196 = sadd.s32 %s195, 1
      %s197 = scalar_select %p194, %s195, %s196
      %p200 = pneg %p194
      %p201 = scmp.eq.s32.totalorder %s23, 1
      %p202 = por %p200, %p201
      %p203 = scmp.ne.s32.totalorder %s195, %s198
      %p204 = scmp.eq.s32.totalorder %s23, 0
      %p205 = por %p203, %p204
      %p206 = scmp.ne.s32.totalorder %s195, %s198
      %p207 = scmp.eq.s32.totalorder %s28, 1
      %p208 = por %p206, %p207
      %p209 = scmp.ne.s32.totalorder %s198, %s199
      %p210 = scmp.eq.s32.totalorder %s28, 0
      %p211 = por %p209, %p210
      %p212 = scmp.ne.s32.totalorder %s198, %s199
      %p213 = scmp.eq.s32.totalorder %s29, 1
      %p214 = por %p212, %p213
      %p216 = scmp.ne.s32.totalorder %s199, %s215
      %p217 = scmp.eq.s32.totalorder %s29, 0
      %p218 = por %p216, %p217
      %s219 = ssub.s32 %s23, %s30
      %p220 = scmp.eq.s32.totalorder %s219, 0
      %s222 = sadd.s32 %s221, 1
      %s223 = scalar_select %p220, %s221, %s222
      %p226 = pneg %p220
      %p227 = scmp.eq.s32.totalorder %s23, 1
      %p228 = por %p226, %p227
      %p229 = scmp.ne.s32.totalorder %s221, %s224
      %p230 = scmp.eq.s32.totalorder %s23, 0
      %p231 = por %p229, %p230
      %p232 = scmp.ne.s32.totalorder %s221, %s224
      %p233 = scmp.eq.s32.totalorder %s28, 1
      %p234 = por %p232, %p233
      %p235 = scmp.ne.s32.totalorder %s224, %s225
      %p236 = scmp.eq.s32.totalorder %s28, 0
      %p237 = por %p235, %p236
      %p238 = scmp.ne.s32.totalorder %s224, %s225
      %p239 = scmp.eq.s32.totalorder %s29, 1
      %p240 = por %p238, %p239
      %p242 = scmp.ne.s32.totalorder %s225, %s241
      %p243 = scmp.eq.s32.totalorder %s29, 0
      %p244 = por %p242, %p243
      %s245 = ssub.s32 %s23, %s30
      %p246 = scmp.eq.s32.totalorder %s245, 0
      %s248 = sadd.s32 %s247, 1
      %s249 = scalar_select %p246, %s247, %s248
      %p252 = pneg %p246
      %p253 = scmp.eq.s32.totalorder %s23, 1
      %p254 = por %p252, %p253
      %p255 = scmp.ne.s32.totalorder %s247, %s250
      %p256 = scmp.eq.s32.totalorder %s23, 0
      %p257 = por %p255, %p256
      %p258 = scmp.ne.s32.totalorder %s247, %s250
      %p259 = scmp.eq.s32.totalorder %s28, 1
      %p260 = por %p258, %p259
      %p261 = scmp.ne.s32.totalorder %s250, %s251
      %p262 = scmp.eq.s32.totalorder %s28, 0
      %p263 = por %p261, %p262
      %p264 = scmp.ne.s32.totalorder %s250, %s251
      %p265 = scmp.eq.s32.totalorder %s29, 1
      %p266 = por %p264, %p265
      %p268 = scmp.ne.s32.totalorder %s251, %s267
      %p269 = scmp.eq.s32.totalorder %s29, 0
      %p270 = por %p268, %p269
      %s271 = ssub.s32 %s23, %s30
      %p272 = scmp.eq.s32.totalorder %s271, 0
      %s274 = sadd.s32 %s273, 1
      %s275 = scalar_select %p272, %s273, %s274
      %p278 = pneg %p272
      %p279 = scmp.eq.s32.totalorder %s23, 1
      %p280 = por %p278, %p279
      %p281 = scmp.ne.s32.totalorder %s273, %s276
      %p282 = scmp.eq.s32.totalorder %s23, 0
      %p283 = por %p281, %p282
      %p284 = scmp.ne.s32.totalorder %s273, %s276
      %p285 = scmp.eq.s32.totalorder %s28, 1
      %p286 = por %p284, %p285
      %p287 = scmp.ne.s32.totalorder %s276, %s277
      %p288 = scmp.eq.s32.totalorder %s28, 0
      %p289 = por %p287, %p288
      %p290 = scmp.ne.s32.totalorder %s276, %s277
      %p291 = scmp.eq.s32.totalorder %s29, 1
      %p292 = por %p290, %p291
      %p294 = scmp.ne.s32.totalorder %s277, %s293
      %p295 = scmp.eq.s32.totalorder %s29, 0
      %p296 = por %p294, %p295
      %s297 = ssub.s32 %s23, %s30
      %p298 = scmp.eq.s32.totalorder %s297, 0
      %s300 = sadd.s32 %s299, 1
      %s301 = scalar_select %p298, %s299, %s300
      %p304 = pneg %p298
      %p305 = scmp.eq.s32.totalorder %s23, 1
      %p306 = por %p304, %p305
      %p307 = scmp.ne.s32.totalorder %s299, %s302
      %p308 = scmp.eq.s32.totalorder %s23, 0
      %p309 = por %p307, %p308
      %p310 = scmp.ne.s32.totalorder %s299, %s302
      %p311 = scmp.eq.s32.totalorder %s28, 1
      %p312 = por %p310, %p311
      %p313 = scmp.ne.s32.totalorder %s302, %s303
      %p314 = scmp.eq.s32.totalorder %s28, 0
      %p315 = por %p313, %p314
      %p316 = scmp.ne.s32.totalorder %s302, %s303
      %p317 = scmp.eq.s32.totalorder %s29, 1
      %p318 = por %p316, %p317
      %p320 = scmp.ne.s32.totalorder %s303, %s319
      %p321 = scmp.eq.s32.totalorder %s29, 0
      %p322 = por %p320, %p321
      %s323 = ssub.s32 %s23, %s30
      %p324 = scmp.eq.s32.totalorder %s323, 0
      %s326 = sadd.s32 %s325, 1
      %s327 = scalar_select %p324, %s325, %s326
      %p330 = pneg %p324
      %p331 = scmp.eq.s32.totalorder %s23, 1
      %p332 = por %p330, %p331
      %p333 = scmp.ne.s32.totalorder %s325, %s328
      %p334 = scmp.eq.s32.totalorder %s23, 0
      %p335 = por %p333, %p334
      %p336 = scmp.ne.s32.totalorder %s325, %s328
      %p337 = scmp.eq.s32.totalorder %s28, 1
      %p338 = por %p336, %p337
      %p339 = scmp.ne.s32.totalorder %s328, %s329
      %p340 = scmp.eq.s32.totalorder %s28, 0
      %p341 = por %p339, %p340
      %p342 = scmp.ne.s32.totalorder %s328, %s329
      %p343 = scmp.eq.s32.totalorder %s29, 1
      %p344 = por %p342, %p343
      %p346 = scmp.ne.s32.totalorder %s329, %s345
      %p347 = scmp.eq.s32.totalorder %s29, 0
      %p348 = por %p346, %p347
      %s349 = ssub.s32 %s23, %s30
      %p350 = scmp.eq.s32.totalorder %s349, 0
      %s352 = sadd.s32 %s351, 1
      %s353 = scalar_select %p350, %s351, %s352
      %p356 = pneg %p350
      %p357 = scmp.eq.s32.totalorder %s23, 1
      %p358 = por %p356, %p357
      %p359 = scmp.ne.s32.totalorder %s351, %s354
      %p360 = scmp.eq.s32.totalorder %s23, 0
      %p361 = por %p359, %p360
      %p362 = scmp.ne.s32.totalorder %s351, %s354
      %p363 = scmp.eq.s32.totalorder %s28, 1
      %p364 = por %p362, %p363
      %p365 = scmp.ne.s32.totalorder %s354, %s355
      %p366 = scmp.eq.s32.totalorder %s28, 0
      %p367 = por %p365, %p366
      %p368 = scmp.ne.s32.totalorder %s354, %s355
      %p369 = scmp.eq.s32.totalorder %s29, 1
      %p370 = por %p368, %p369
      %p372 = scmp.ne.s32.totalorder %s355, %s371
      %p373 = scmp.eq.s32.totalorder %s29, 0
      %p374 = por %p372, %p373
      %s375 = ssub.s32 %s23, %s30
      %p376 = scmp.eq.s32.totalorder %s375, 0
      %s378 = sadd.s32 %s377, 1
      %s379 = scalar_select %p376, %s377, %s378
      %p382 = pneg %p376
      %p383 = scmp.eq.s32.totalorder %s23, 1
      %p384 = por %p382, %p383
      %p385 = scmp.ne.s32.totalorder %s377, %s380
      %p386 = scmp.eq.s32.totalorder %s23, 0
      %p387 = por %p385, %p386
      %p388 = scmp.ne.s32.totalorder %s377, %s380
      %p389 = scmp.eq.s32.totalorder %s28, 1
      %p390 = por %p388, %p389
      %p391 = scmp.ne.s32.totalorder %s380, %s381
      %p392 = scmp.eq.s32.totalorder %s28, 0
      %p393 = por %p391, %p392
      %p394 = scmp.ne.s32.totalorder %s380, %s381
      %p395 = scmp.eq.s32.totalorder %s29, 1
      %p396 = por %p394, %p395
      %p398 = scmp.ne.s32.totalorder %s381, %s397
      %p399 = scmp.eq.s32.totalorder %s29, 0
      %p400 = por %p398, %p399
      %s401 = ssub.s32 %s23, %s30
      %p402 = scmp.eq.s32.totalorder %s401, 0
      %s404 = sadd.s32 %s403, 1
      %s405 = scalar_select %p402, %s403, %s404
      %p408 = pneg %p402
      %p409 = scmp.eq.s32.totalorder %s23, 1
      %p410 = por %p408, %p409
      %p411 = scmp.ne.s32.totalorder %s403, %s406
      %p412 = scmp.eq.s32.totalorder %s23, 0
      %p413 = por %p411, %p412
      %p414 = scmp.ne.s32.totalorder %s403, %s406
      %p415 = scmp.eq.s32.totalorder %s28, 1
      %p416 = por %p414, %p415
      %p417 = scmp.ne.s32.totalorder %s406, %s407
      %p418 = scmp.eq.s32.totalorder %s28, 0
      %p419 = por %p417, %p418
      %p420 = scmp.ne.s32.totalorder %s406, %s407
      %p421 = scmp.eq.s32.totalorder %s29, 1
      %p422 = por %p420, %p421
      %p424 = scmp.ne.s32.totalorder %s407, %s423
      %p425 = scmp.eq.s32.totalorder %s29, 0
      %p426 = por %p424, %p425
      %s428 = sadd.s32 %s427, 1
      %p431 = scmp.eq.s32.totalorder %s23, 1
      %p432 = scmp.ne.s32.totalorder %s427, %s429
      %p433 = scmp.eq.s32.totalorder %s23, 0
      %p434 = por %p432, %p433
      %p435 = scmp.ne.s32.totalorder %s427, %s429
      %p436 = scmp.eq.s32.totalorder %s28, 1
      %p437 = por %p435, %p436
      %p438 = scmp.ne.s32.totalorder %s429, %s430
      %p439 = scmp.eq.s32.totalorder %s28, 0
      %p440 = por %p438, %p439
      %p441 = scmp.ne.s32.totalorder %s429, %s430
      %p442 = scmp.eq.s32.totalorder %s29, 1
      %p443 = por %p441, %p442
      %p445 = scmp.ne.s32.totalorder %s430, %s444
      %p446 = scmp.eq.s32.totalorder %s29, 0
      %p447 = por %p445, %p446
      %p448 = scmp.le.s32.totalorder 1, %s23
      %p449 = scmp.lt.s32.totalorder %s23, 3
      %p450 = pnand %p448, %p449
      %p451 = pneg %p450
      // Predicated region
      $region9: #{roberta_forward.1} parent=5 // pred_check
        _
      $region10: #{roberta_forward.1} parent=5 // pred_check_branch
        %453 = sbr.rel (%p450) target = $region12
      $region11: #{roberta_forward.1} parent=5 // pred_region
        %s454 = ssub.s32 %s23, 1
        // Predicated region
        $region13: #{roberta_forward.1} parent=11 // pred_check
          %p455 = pneg %p44
        $region14: #{roberta_forward.1} parent=11 // pred_check_branch
          %457 = sbr.rel (%p455) target = $region16
        $region15: #{roberta_forward.1} parent=11 // pred_region
          _
        $region16: #{roberta_forward.1} parent=11 // pred_fallthru
          _
        // Predicated region
        $region17: #{roberta_forward.1} parent=11 // pred_check
          %p458 = pneg %p65
        $region18: #{roberta_forward.1} parent=11 // pred_check_branch
          %460 = sbr.rel (%p458) target = $region20
        $region19: #{roberta_forward.1} parent=11 // pred_region
          _
        $region20: #{roberta_forward.1} parent=11 // pred_fallthru
          _
        // Predicated region
        $region21: #{roberta_forward.1} parent=11 // pred_check
          %p461 = pneg %p86
        $region22: #{roberta_forward.1} parent=11 // pred_check_branch
          %463 = sbr.rel (%p461) target = $region24
        $region23: #{roberta_forward.1} parent=11 // pred_region
          _
        $region24: #{roberta_forward.1} parent=11 // pred_fallthru
          _
        // Predicated region
        $region25: #{roberta_forward.1} parent=11 // pred_check
          %p464 = pneg %p107
        $region26: #{roberta_forward.1} parent=11 // pred_check_branch
          %466 = sbr.rel (%p464) target = $region28
        $region27: #{roberta_forward.1} parent=11 // pred_region
          _
        $region28: #{roberta_forward.1} parent=11 // pred_fallthru
          _
      $region12: #{roberta_forward.1} parent=5 // pred_fallthru
        _
      %p467 = scmp.lt.s32.totalorder %s23, 2
      // Predicated region
      $region29: #{roberta_forward.1} parent=5 // pred_check
        %p468 = pneg %p467
      $region30: #{roberta_forward.1} parent=5 // pred_check_branch
        %470 = sbr.rel (%p468) target = $region32
      $region31: #{roberta_forward.1} parent=5 // pred_region
        // Predicated region
        $region33: #{roberta_forward.1} parent=31 // pred_check
          %p471 = pneg %p127
        $region34: #{roberta_forward.1} parent=31 // pred_check_branch
          %473 = sbr.rel (%p471) target = $region36
        $region35: #{roberta_forward.1} parent=31 // pred_region
          %p474 = scmp.lt.s32.totalorder %s23, 1
          %s475 = scalar_select %p474, %s23, 1
          %s476 = smul.addr %s475, 4
          %s477 = smul.addr %s476, 8
          %s478 = scalar_lea.vmem %s4, %s477
        $region36: #{roberta_forward.1} parent=31 // pred_fallthru
          _
        // Predicated region
        $region37: #{roberta_forward.1} parent=31 // pred_check
          %p479 = pneg %p153
        $region38: #{roberta_forward.1} parent=31 // pred_check_branch
          %481 = sbr.rel (%p479) target = $region40
        $region39: #{roberta_forward.1} parent=31 // pred_region
          %p482 = scmp.lt.s32.totalorder %s23, 1
          %s483 = scalar_select %p482, %s23, 1
          %s484 = scalar_lea.vmem %s5, %s483
        $region40: #{roberta_forward.1} parent=31 // pred_fallthru
          _
        // Predicated region
        $region41: #{roberta_forward.1} parent=31 // pred_check
          %p485 = pneg %p179
        $region42: #{roberta_forward.1} parent=31 // pred_check_branch
          %487 = sbr.rel (%p485) target = $region44
        $region43: #{roberta_forward.1} parent=31 // pred_region
          %p488 = scmp.lt.s32.totalorder %s23, 1
          %s489 = scalar_select %p488, %s23, 1
          %s490 = smul.addr %s489, 4
          %s491 = smul.addr %s490, 8
          %s492 = scalar_lea.vmem %s6, %s491
        $region44: #{roberta_forward.1} parent=31 // pred_fallthru
          _
        // Predicated region
        $region45: #{roberta_forward.1} parent=31 // pred_check
          %p493 = pneg %p205
        $region46: #{roberta_forward.1} parent=31 // pred_check_branch
          %495 = sbr.rel (%p493) target = $region48
        $region47: #{roberta_forward.1} parent=31 // pred_region
          %p496 = scmp.lt.s32.totalorder %s23, 1
          %s497 = scalar_select %p496, %s23, 1
          %s498 = scalar_lea.vmem %s7, %s497
        $region48: #{roberta_forward.1} parent=31 // pred_fallthru
          _
        // Predicated region
        $region49: #{roberta_forward.1} parent=31 // pred_check
          %p499 = pneg %p231
        $region50: #{roberta_forward.1} parent=31 // pred_check_branch
          %501 = sbr.rel (%p499) target = $region52
        $region51: #{roberta_forward.1} parent=31 // pred_region
          %p502 = scmp.lt.s32.totalorder %s23, 1
          %s503 = scalar_select %p502, %s23, 1
          %s504 = scalar_lea.vmem %s8, %s503
        $region52: #{roberta_forward.1} parent=31 // pred_fallthru
          _
        // Predicated region
        $region53: #{roberta_forward.1} parent=31 // pred_check
          %p505 = pneg %p257
        $region54: #{roberta_forward.1} parent=31 // pred_check_branch
          %507 = sbr.rel (%p505) target = $region56
        $region55: #{roberta_forward.1} parent=31 // pred_region
          %p508 = scmp.lt.s32.totalorder %s23, 1
          %s509 = scalar_select %p508, %s23, 1
          %s510 = scalar_lea.vmem %s9, %s509
        $region56: #{roberta_forward.1} parent=31 // pred_fallthru
          _
        // Predicated region
        $region57: #{roberta_forward.1} parent=31 // pred_check
          %p511 = pneg %p283
        $region58: #{roberta_forward.1} parent=31 // pred_check_branch
          %513 = sbr.rel (%p511) target = $region60
        $region59: #{roberta_forward.1} parent=31 // pred_region
          %p514 = scmp.lt.s32.totalorder %s23, 1
          %s515 = scalar_select %p514, %s23, 1
          %s516 = smul.addr %s515, 4
          %s517 = smul.addr %s516, 8
          %s518 = scalar_lea.vmem %s10, %s517
        $region60: #{roberta_forward.1} parent=31 // pred_fallthru
          _
        // Predicated region
        $region61: #{roberta_forward.1} parent=31 // pred_check
          %p519 = pneg %p309
        $region62: #{roberta_forward.1} parent=31 // pred_check_branch
          %521 = sbr.rel (%p519) target = $region64
        $region63: #{roberta_forward.1} parent=31 // pred_region
          %p522 = scmp.lt.s32.totalorder %s23, 1
          %s523 = scalar_select %p522, %s23, 1
          %s524 = scalar_lea.vmem %s11, %s523
        $region64: #{roberta_forward.1} parent=31 // pred_fallthru
          _
        // Predicated region
        $region65: #{roberta_forward.1} parent=31 // pred_check
          %p525 = pneg %p335
        $region66: #{roberta_forward.1} parent=31 // pred_check_branch
          %527 = sbr.rel (%p525) target = $region68
        $region67: #{roberta_forward.1} parent=31 // pred_region
          %p528 = scmp.lt.s32.totalorder %s23, 1
          %s529 = scalar_select %p528, %s23, 1
          %s530 = smul.addr %s529, 8
          %s531 = smul.addr %s530, 8
          %s532 = scalar_lea.vmem %s12, %s531
        $region68: #{roberta_forward.1} parent=31 // pred_fallthru
          _
        // Predicated region
        $region69: #{roberta_forward.1} parent=31 // pred_check
          %p533 = pneg %p361
        $region70: #{roberta_forward.1} parent=31 // pred_check_branch
          %535 = sbr.rel (%p533) target = $region72
        $region71: #{roberta_forward.1} parent=31 // pred_region
          %p536 = scmp.lt.s32.totalorder %s23, 1
          %s537 = scalar_select %p536, %s23, 1
          %s538 = scalar_lea.vmem %s13, %s537
        $region72: #{roberta_forward.1} parent=31 // pred_fallthru
          _
        // Predicated region
        $region73: #{roberta_forward.1} parent=31 // pred_check
          %p539 = pneg %p387
        $region74: #{roberta_forward.1} parent=31 // pred_check_branch
          %541 = sbr.rel (%p539) target = $region76
        $region75: #{roberta_forward.1} parent=31 // pred_region
          %p542 = scmp.lt.s32.totalorder %s23, 1
          %s543 = scalar_select %p542, %s23, 1
          %s544 = scalar_lea.vmem %s14, %s543
        $region76: #{roberta_forward.1} parent=31 // pred_fallthru
          _
        // Predicated region
        $region77: #{roberta_forward.1} parent=31 // pred_check
          %p545 = pneg %p413
        $region78: #{roberta_forward.1} parent=31 // pred_check_branch
          %547 = sbr.rel (%p545) target = $region80
        $region79: #{roberta_forward.1} parent=31 // pred_region
          %p548 = scmp.lt.s32.totalorder %s23, 1
          %s549 = scalar_select %p548, %s23, 1
          %s550 = scalar_lea.vmem %s15, %s549
        $region80: #{roberta_forward.1} parent=31 // pred_fallthru
          _
      $region32: #{roberta_forward.1} parent=5 // pred_fallthru
        _
      %p551 = scmp.le.s32.totalorder 1, %s23
      %p552 = scmp.lt.s32.totalorder %s23, 3
      %p553 = pnand %p551, %p552
      %p554 = pneg %p553
      // Predicated region
      $region81: #{roberta_forward.1} parent=5 // pred_check
        _
      $region82: #{roberta_forward.1} parent=5 // pred_check_branch
        %556 = sbr.rel (%p553) target = $region84
      $region83: #{roberta_forward.1} parent=5 // pred_region
        %s557 = ssub.s32 %s23, 1
        %p558 = pneg %p44
        %p559 = pneg %p41
        %p560 = pneg %p65
        %p561 = pneg %p62
        %p562 = pneg %p86
        %p563 = pneg %p83
        %p564 = pneg %p107
        %p565 = pneg %p104
        %p566 = scmp.lt.s32.totalorder %s28, 1
        %s567 = scalar_select %p566, %s28, 1
        %s568 = smul.addr %s567, 4
        %s569 = smul.addr %s568, 8
        %s570 = scalar_lea.vmem %s4, %s569
        %p571 = pneg %p133
        %p572 = pneg %p130
        %p573 = scmp.lt.s32.totalorder %s28, 1
        %s574 = scalar_select %p573, %s28, 1
        %s575 = scalar_lea.vmem %s5, %s574
        %p576 = pneg %p159
        %p577 = pneg %p156
        %p578 = scmp.lt.s32.totalorder %s28, 1
        %s579 = scalar_select %p578, %s28, 1
        %s580 = smul.addr %s579, 4
        %s581 = smul.addr %s580, 8
        %s582 = scalar_lea.vmem %s6, %s581
        %p583 = pneg %p185
        %p584 = pneg %p182
        %p585 = scmp.lt.s32.totalorder %s28, 1
        %s586 = scalar_select %p585, %s28, 1
        %s587 = scalar_lea.vmem %s7, %s586
        %p588 = pneg %p211
        %p589 = pneg %p208
        %p590 = scmp.lt.s32.totalorder %s28, 1
        %s591 = scalar_select %p590, %s28, 1
        %s592 = scalar_lea.vmem %s8, %s591
        %p593 = pneg %p237
        %p594 = pneg %p234
        %p595 = scmp.lt.s32.totalorder %s28, 1
        %s596 = scalar_select %p595, %s28, 1
        %s597 = scalar_lea.vmem %s9, %s596
        %p598 = pneg %p263
        %p599 = pneg %p260
        %p600 = scmp.lt.s32.totalorder %s28, 1
        %s601 = scalar_select %p600, %s28, 1
        %s602 = smul.addr %s601, 4
        %s603 = smul.addr %s602, 8
        %s604 = scalar_lea.vmem %s10, %s603
        %p605 = pneg %p289
        %p606 = pneg %p286
        %p607 = scmp.lt.s32.totalorder %s28, 1
        %s608 = scalar_select %p607, %s28, 1
        %s609 = scalar_lea.vmem %s11, %s608
        %p610 = pneg %p315
        %p611 = pneg %p312
        %p612 = scmp.lt.s32.totalorder %s28, 1
        %s613 = scalar_select %p612, %s28, 1
        %s614 = smul.addr %s613, 8
        %s615 = smul.addr %s614, 8
        %s616 = scalar_lea.vmem %s12, %s615
        %p617 = pneg %p341
        %p618 = pneg %p338
        %p619 = scmp.lt.s32.totalorder %s28, 1
        %s620 = scalar_select %p619, %s28, 1
        %s621 = scalar_lea.vmem %s13, %s620
        %p622 = pneg %p367
        %p623 = pneg %p364
        %p624 = scmp.lt.s32.totalorder %s28, 1
        %s625 = scalar_select %p624, %s28, 1
        %s626 = scalar_lea.vmem %s14, %s625
        %p627 = pneg %p393
        %p628 = pneg %p390
        %p629 = scmp.lt.s32.totalorder %s28, 1
        %s630 = scalar_select %p629, %s28, 1
        %s631 = scalar_lea.vmem %s15, %s630
        %p632 = pneg %p419
        %p633 = pneg %p416
        %p634 = pneg %p440
        %p635 = pneg %p437
        %p636 = scmp.lt.s32.totalorder %s28, 1
        %s637 = scalar_select %p636, %s28, 1
        %s638 = smul.addr %s637, 4
        %s639 = smul.addr %s638, 8
        %s640 = scalar_lea.vmem %s4, %s639
        %p641 = scmp.lt.s32.totalorder %s28, 1
        %s642 = scalar_select %p641, %s28, 1
        %s643 = scalar_lea.vmem %s5, %s642
        %p644 = scmp.lt.s32.totalorder %s28, 1
        %s645 = scalar_select %p644, %s28, 1
        %s646 = smul.addr %s645, 4
        %s647 = smul.addr %s646, 8
        %s648 = scalar_lea.vmem %s6, %s647
        %p649 = scmp.lt.s32.totalorder %s28, 1
        %s650 = scalar_select %p649, %s28, 1
        %s651 = scalar_lea.vmem %s7, %s650
        %p652 = scmp.lt.s32.totalorder %s28, 1
        %s653 = scalar_select %p652, %s28, 1
        %s654 = scalar_lea.vmem %s8, %s653
        %p655 = scmp.lt.s32.totalorder %s28, 1
        %s656 = scalar_select %p655, %s28, 1
        %s657 = scalar_lea.vmem %s9, %s656
        %p658 = scmp.lt.s32.totalorder %s28, 1
        %s659 = scalar_select %p658, %s28, 1
        %s660 = smul.addr %s659, 4
        %s661 = smul.addr %s660, 8
        %s662 = scalar_lea.vmem %s10, %s661
        %p663 = scmp.lt.s32.totalorder %s28, 1
        %s664 = scalar_select %p663, %s28, 1
        %s665 = scalar_lea.vmem %s11, %s664
        %p666 = scmp.lt.s32.totalorder %s28, 1
        %s667 = scalar_select %p666, %s28, 1
        %s668 = smul.addr %s667, 8
        %s669 = smul.addr %s668, 8
        %s670 = scalar_lea.vmem %s12, %s669
        %p671 = scmp.lt.s32.totalorder %s28, 1
        %s672 = scalar_select %p671, %s28, 1
        %s673 = scalar_lea.vmem %s13, %s672
        %p674 = scmp.lt.s32.totalorder %s28, 1
        %s675 = scalar_select %p674, %s28, 1
        %s676 = scalar_lea.vmem %s14, %s675
        %p677 = scmp.lt.s32.totalorder %s28, 1
        %s678 = scalar_select %p677, %s28, 1
        %s679 = scalar_lea.vmem %s15, %s678
        %p680 = scmp.eq.s32.totalorder %s28, 0
        // Predicated region
        $region85: #{roberta_forward.1} parent=83 // pred_check
          %p681 = pneg %p680
        $region86: #{roberta_forward.1} parent=83 // pred_check_branch
          %683 = sbr.rel (%p681) target = $region88
        $region87: #{roberta_forward.1} parent=83 // pred_region
          %v684 = vld [vmem:[%s0] sm:$0xff]
          %v685 = vld [vmem:[%s0 + $0x8] sm:$0xff]
          %v686 = vld [vmem:[%s2] sm:$0x1]
          %v687 = vld [vmem:[%s3] sm:$0x1]
          %vm688 = vcmask 261120
          %v689 = vsel %vm688, %v684, 0.0
          %690 = vadd.xlane.f32.xlu0 %v689
          %v691 = vpop.xlane.xlu0 %690
          %v692 = vsel %vm688, %v685, 0.0
          %693 = vadd.xlane.f32.xlu0 %v692
          %v694 = vpop.xlane.xlu0 %693
          %v695 = vrcp.pop 32.0
          %v696 = vmul.f32 %v691, %v695
          %v697 = vmul.f32 %v694, %v695
          %v698 = vsub.f32 %v684, %v696
          %v699 = vsub.f32 %v685, %v697
          %v700 = vmul.f32 %v698, %v698
          %v701 = vmul.f32 %v699, %v699
          %v702 = vsel %vm688, %v700, 0.0
          %703 = vadd.xlane.f32.xlu0 %v702
          %v704 = vpop.xlane.xlu0 %703
          %v705 = vsel %vm688, %v701, 0.0
          %706 = vadd.xlane.f32.xlu0 %v705
          %v707 = vpop.xlane.xlu0 %706
          %v708 = vmul.f32 %v704, %v695
          %v709 = vmul.f32 %v707, %v695
          %v710 = vadd.f32 %v708, 1e-05
          %v711 = vadd.f32 %v709, 1e-05
          %v712 = vrsqrt.pop %v710
          %v713 = vrsqrt.pop %v711
          %v714 = vmul.f32 %v698, %v712
          %v715 = vmul.f32 %v699, %v713
          %v717 = vlaneseq
          %v718 = vshrl.u32 %v717, 7
          %v719 = vsub.s32 0, %v718
          %v720 = vrot.slane %v686, %v719
          %v722 = vmul.f32 %v714, %v720
          %v723 = vmul.f32 %v715, %v720
          %v725 = vlaneseq
          %v726 = vshrl.u32 %v725, 7
          %v727 = vsub.s32 0, %v726
          %v728 = vrot.slane %v687, %v727
          %v730 = vadd.f32 %v722, %v728
          %v731 = vadd.f32 %v723, %v728
          %732 = vst.msk [vmem:[#allocation2] sm:$0xff] %vm688, %v730
          %733 = vst.msk [vmem:[#allocation2 + $0x8] sm:$0xff] %vm688, %v731
        $region88: #{roberta_forward.1} parent=83 // pred_fallthru
          _
        %v734 = vld [vmem:[#allocation2] sm:$0xff]
        %v735 = vld [vmem:[#allocation2 + $0x8] sm:$0xff]
        %v736 = vld [vmem:[%s640] sm:$0xff]
        %v737 = vld [vmem:[%s640 + $0x8] sm:$0xff]
        %v738 = vld [vmem:[%s640 + $0x10] sm:$0xff]
        %v739 = vld [vmem:[%s640 + $0x18] sm:$0xff]
        %v740 = vld [vmem:[%s643] sm:$0x1]
        %v742 = vlaneseq
        %v743 = vshrl.u32 %v742, 7
        %v744 = vsub.s32 0, %v743
        %v745 = vrot.slane %v740, %v744
        %vm747 = vcmask 261120
        %v749 = vsel %vm747, %v734, 0
        %v752 = vsel %vm747, %v735, 0
        %754 = vmatprep.subr.mxu0 0.0
        %755 = vmatpush1.msra.mxu0 %v736
        %756 = vmatprep.subr.mxu0 0.0
        %757 = vmatpush1.msra.mxu0 %v737
        %758 = vmatprep.subr.mxu0 0.0
        %759 = vmatpush1.msra.mxu0 %v738
        %760 = vmatprep.subr.mxu0 0.0
        %761 = vmatpush1.msra.mxu0 %v739
        %762 = vmatprep.subr.mxu0 0.0
        %763 = vmatpush1.msra.mxu0 0.0
        %764 = vmatprep.subr.mxu0 0.0
        %765 = vmatpush1.msra.mxu0 0.0
        %766 = vmatprep.subr.mxu0 0.0
        %767 = vmatpush1.msra.mxu0 0.0
        %768 = vmatprep.subr.mxu0 0.0
        %769 = vmatpush1.msra.mxu0 0.0
        %770 = vmatprep.subr.mxu0 0.0
        %771 = vmatpush1.msra.mxu0 0.0
        %772 = vmatprep.subr.mxu0 0.0
        %773 = vmatpush1.msra.mxu0 0.0
        %774 = vmatprep.subr.mxu0 0.0
        %775 = vmatpush1.msra.mxu0 0.0
        %776 = vmatprep.subr.mxu0 0.0
        %777 = vmatpush1.msra.mxu0 0.0
        %778 = vmatprep.subr.mxu0 0.0
        %779 = vmatpush1.msra.mxu0 0.0
        %780 = vmatprep.subr.mxu0 0.0
        %781 = vmatpush1.msra.mxu0 0.0
        %782 = vmatprep.subr.mxu0 0.0
        %783 = vmatpush1.msra.mxu0 0.0
        %784 = vmatprep.subr.mxu0 0.0
        %785 = vmatpush1.msra.mxu0 0.0
        %786 = vmatprep.subr.mxu0 0.0
        %787 = vmatpush1.msra.mxu0 0.0
        %788 = vmatprep.subr.mxu0 0.0
        %789 = vmatpush1.msra.mxu0 0.0
        %790 = vmatprep.subr.mxu0 0.0
        %791 = vmatpush1.msra.mxu0 0.0
        %792 = vmatprep.subr.mxu0 0.0
        %793 = vmatpush1.msra.mxu0 0.0
        %794 = vmatprep.subr.mxu0 0.0
        %795 = vmatpush1.msra.mxu0 0.0
        %796 = vmatprep.subr.mxu0 0.0
        %797 = vmatpush1.msra.mxu0 0.0
        %798 = vmatprep.subr.mxu0 0.0
        %799 = vmatpush1.msra.mxu0 0.0
        %800 = vmatprep.subr.mxu0 0.0
        %801 = vmatpush1.msra.mxu0 0.0
        %802 = vmatprep.subr.mxu0 0.0
        %803 = vmatpush1.msra.mxu0 0.0
        %804 = vmatprep.subr.mxu0 0.0
        %805 = vmatpush1.msra.mxu0 0.0
        %806 = vmatprep.subr.mxu0 0.0
        %807 = vmatpush1.msra.mxu0 0.0
        %808 = vmatprep.subr.mxu0 0.0
        %809 = vmatpush1.msra.mxu0 0.0
        %810 = vmatprep.subr.mxu0 0.0
        %811 = vmatpush1.msra.mxu0 0.0
        %812 = vmatprep.subr.mxu0 0.0
        %813 = vmatpush1.msra.mxu0 0.0
        %814 = vmatprep.subr.mxu0 0.0
        %815 = vmatpush1.msra.mxu0 0.0
        %816 = vmatprep.subr.mxu0 0.0
        %817 = vmatpush1.msra.mxu0 0.0
        %818 = vmatprep.mubr.f32.mxu0 0.0
        %819 = vmatmul.mubr.f32.gmra.mrb[0].mxu0 %v749
        %v820 = vpop.f32.mrb[0].mxu0
        %v821 = vadd.f32 %v745, %v820
        %v822 = vpop.f32.mrb[0].mxu0
        %823 = vmatprep.mubr.f32.mxu0 0.0
        %824 = vmatmul.mubr.f32.gmra.mrb[0].mxu0 %v752
        %v825 = vpop.f32.mrb[0].mxu0
        %v826 = vadd.f32 %v745, %v825
        %v827 = vpop.f32.mrb[0].mxu0
        %828 = vdwg.mxu0
        %v829 = vld [vmem:[%s1] sm:$0x1]
        %v830 = vld [vmem:[%s1 + $0x1] sm:$0x1]
        %v831 = vld [vmem:[%s648] sm:$0xff]
        %v832 = vld [vmem:[%s648 + $0x8] sm:$0xff]
        %v833 = vld [vmem:[%s648 + $0x10] sm:$0xff]
        %v834 = vld [vmem:[%s648 + $0x18] sm:$0xff]
        %836 = vrot.lane.b32.xlu0 %v821, 96
        %v837 = vpop.permute.xlu0 %836
        %vm838 = vcmask 130048
        %v839 = vsel %vm838, %v821, 0
        %v841 = vsel %vm838, %v837, 0
        %843 = vmatprep.subr.mxu0 0.0
        %844 = vmatpush1.xpose.msra.mxu0 %v841
        %845 = vmatprep.subr.mxu0 0.0
        %846 = vmatpush1.xpose.msra.mxu0 0.0
        %847 = vmatprep.subr.mxu0 0.0
        %848 = vmatpush1.xpose.msra.mxu0 0.0
        %849 = vmatprep.subr.mxu0 0.0
        %850 = vmatpush1.xpose.msra.mxu0 0.0
        %851 = vmatprep.subr.mxu0 0.0
        %852 = vmatpush1.xpose.msra.mxu0 0.0
        %853 = vmatprep.subr.mxu0 0.0
        %854 = vmatpush1.xpose.msra.mxu0 0.0
        %855 = vmatprep.subr.mxu0 0.0
        %856 = vmatpush1.xpose.msra.mxu0 0.0
        %857 = vmatprep.subr.mxu0 0.0
        %858 = vmatpush1.xpose.msra.mxu0 0.0
        %859 = vmatprep.subr.mxu0 0.0
        %860 = vmatpush1.xpose.msra.mxu0 0.0
        %861 = vmatprep.subr.mxu0 0.0
        %862 = vmatpush1.xpose.msra.mxu0 0.0
        %863 = vmatprep.subr.mxu0 0.0
        %864 = vmatpush1.xpose.msra.mxu0 0.0
        %865 = vmatprep.subr.mxu0 0.0
        %866 = vmatpush1.xpose.msra.mxu0 0.0
        %867 = vmatprep.subr.mxu0 0.0
        %868 = vmatpush1.xpose.msra.mxu0 0.0
        %869 = vmatprep.subr.mxu0 0.0
        %870 = vmatpush1.xpose.msra.mxu0 0.0
        %871 = vmatprep.subr.mxu0 0.0
        %872 = vmatpush1.xpose.msra.mxu0 0.0
        %873 = vmatprep.subr.mxu0 0.0
        %874 = vmatpush1.xpose.msra.mxu0 0.0
        %875 = vmatprep.subr.mxu0 0.0
        %876 = vmatpush1.xpose.msra.mxu0 0.0
        %877 = vmatprep.subr.mxu0 0.0
        %878 = vmatpush1.xpose.msra.mxu0 0.0
        %879 = vmatprep.subr.mxu0 0.0
        %880 = vmatpush1.xpose.msra.mxu0 0.0
        %881 = vmatprep.subr.mxu0 0.0
        %882 = vmatpush1.xpose.msra.mxu0 0.0
        %883 = vmatprep.subr.mxu0 0.0
        %884 = vmatpush1.xpose.msra.mxu0 0.0
        %885 = vmatprep.subr.mxu0 0.0
        %886 = vmatpush1.xpose.msra.mxu0 0.0
        %887 = vmatprep.subr.mxu0 0.0
        %888 = vmatpush1.xpose.msra.mxu0 0.0
        %889 = vmatprep.subr.mxu0 0.0
        %890 = vmatpush1.xpose.msra.mxu0 0.0
        %891 = vmatprep.subr.mxu0 0.0
        %892 = vmatpush1.xpose.msra.mxu0 0.0
        %893 = vmatprep.subr.mxu0 0.0
        %894 = vmatpush1.xpose.msra.mxu0 0.0
        %895 = vmatprep.subr.mxu0 0.0
        %896 = vmatpush1.xpose.msra.mxu0 0.0
        %897 = vmatprep.subr.mxu0 0.0
        %898 = vmatpush1.xpose.msra.mxu0 0.0
        %899 = vmatprep.subr.mxu0 0.0
        %900 = vmatpush1.xpose.msra.mxu0 0.0
        %901 = vmatprep.subr.mxu0 0.0
        %902 = vmatpush1.xpose.msra.mxu0 0.0
        %903 = vmatprep.subr.mxu0 0.0
        %904 = vmatpush1.xpose.msra.mxu0 0.0
        %905 = vmatprep.subr.mxu0 0.0
        %906 = vmatpush1.xpose.msra.mxu0 0.0
        %907 = vmatprep.mubr.f32.mxu0 0.0
        %908 = vmatmul.mubr.f32.gmra.mrb[0].mxu0 %v839
        %v909 = vpop.f32.mrb[0].mxu0
        %v910 = vadd.f32 0.0, %v909
        %v911 = vpop.f32.mrb[0].mxu0
        %912 = vdwg.mxu0
        %914 = vrot.lane.b32.xlu0 %v826, 96
        %v915 = vpop.permute.xlu0 %914
        %v916 = vsel %vm838, %v826, 0
        %v918 = vsel %vm838, %v915, 0
        %920 = vmatprep.subr.mxu0 0.0
        %921 = vmatpush1.xpose.msra.mxu0 %v918
        %922 = vmatprep.subr.mxu0 0.0
        %923 = vmatpush1.xpose.msra.mxu0 0.0
        %924 = vmatprep.subr.mxu0 0.0
        %925 = vmatpush1.xpose.msra.mxu0 0.0
        %926 = vmatprep.subr.mxu0 0.0
        %927 = vmatpush1.xpose.msra.mxu0 0.0
        %928 = vmatprep.subr.mxu0 0.0
        %929 = vmatpush1.xpose.msra.mxu0 0.0
        %930 = vmatprep.subr.mxu0 0.0
        %931 = vmatpush1.xpose.msra.mxu0 0.0
        %932 = vmatprep.subr.mxu0 0.0
        %933 = vmatpush1.xpose.msra.mxu0 0.0
        %934 = vmatprep.subr.mxu0 0.0
        %935 = vmatpush1.xpose.msra.mxu0 0.0
        %936 = vmatprep.subr.mxu0 0.0
        %937 = vmatpush1.xpose.msra.mxu0 0.0
        %938 = vmatprep.subr.mxu0 0.0
        %939 = vmatpush1.xpose.msra.mxu0 0.0
        %940 = vmatprep.subr.mxu0 0.0
        %941 = vmatpush1.xpose.msra.mxu0 0.0
        %942 = vmatprep.subr.mxu0 0.0
        %943 = vmatpush1.xpose.msra.mxu0 0.0
        %944 = vmatprep.subr.mxu0 0.0
        %945 = vmatpush1.xpose.msra.mxu0 0.0
        %946 = vmatprep.subr.mxu0 0.0
        %947 = vmatpush1.xpose.msra.mxu0 0.0
        %948 = vmatprep.subr.mxu0 0.0
        %949 = vmatpush1.xpose.msra.mxu0 0.0
        %950 = vmatprep.subr.mxu0 0.0
        %951 = vmatpush1.xpose.msra.mxu0 0.0
        %952 = vmatprep.subr.mxu0 0.0
        %953 = vmatpush1.xpose.msra.mxu0 0.0
        %954 = vmatprep.subr.mxu0 0.0
        %955 = vmatpush1.xpose.msra.mxu0 0.0
        %956 = vmatprep.subr.mxu0 0.0
        %957 = vmatpush1.xpose.msra.mxu0 0.0
        %958 = vmatprep.subr.mxu0 0.0
        %959 = vmatpush1.xpose.msra.mxu0 0.0
        %960 = vmatprep.subr.mxu0 0.0
        %961 = vmatpush1.xpose.msra.mxu0 0.0
        %962 = vmatprep.subr.mxu0 0.0
        %963 = vmatpush1.xpose.msra.mxu0 0.0
        %964 = vmatprep.subr.mxu0 0.0
        %965 = vmatpush1.xpose.msra.mxu0 0.0
        %966 = vmatprep.subr.mxu0 0.0
        %967 = vmatpush1.xpose.msra.mxu0 0.0
        %968 = vmatprep.subr.mxu0 0.0
        %969 = vmatpush1.xpose.msra.mxu0 0.0
        %970 = vmatprep.subr.mxu0 0.0
        %971 = vmatpush1.xpose.msra.mxu0 0.0
        %972 = vmatprep.subr.mxu0 0.0
        %973 = vmatpush1.xpose.msra.mxu0 0.0
        %974 = vmatprep.subr.mxu0 0.0
        %975 = vmatpush1.xpose.msra.mxu0 0.0
        %976 = vmatprep.subr.mxu0 0.0
        %977 = vmatpush1.xpose.msra.mxu0 0.0
        %978 = vmatprep.subr.mxu0 0.0
        %979 = vmatpush1.xpose.msra.mxu0 0.0
        %980 = vmatprep.subr.mxu0 0.0
        %981 = vmatpush1.xpose.msra.mxu0 0.0
        %982 = vmatprep.subr.mxu0 0.0
        %983 = vmatpush1.xpose.msra.mxu0 0.0
        %984 = vmatprep.mubr.f32.mxu0 0.0
        %985 = vmatmul.mubr.f32.gmra.mrb[0].mxu0 %v916
        %v986 = vpop.f32.mrb[0].mxu0
        %v987 = vadd.f32 0.0, %v986
        %v988 = vpop.f32.mrb[0].mxu0
        %989 = vdwg.mxu0
        %v990 = vmul.f32 %v910, 0.25
        %v991 = vmul.f32 %v987, 0.25
        %v994 = vlaneseq
        %v995 = vshrl.u32 %v994, 7
        %v996 = vsub.s32 0, %v995
        %v997 = vrot.slane %v829, %v996
        %v998 = vlaneseq
        %v999 = vshrl.u32 %v998, 7
        %v1000 = vsub.s32 0, %v999
        %v1001 = vrot.slane %v830, %v1000
        %v1004 = vadd.f32 %v990, %v997
        %v1005 = vadd.f32 %v991, %v1001
        %vm1006 = vcmask 64512
        %v1007 = vsel %vm1006, %v1004, -inf
        %1008 = vmax.xlane.f32.xlu0 %v1007
        %v1009 = vpop.xlane.xlu0 %1008
        %v1010 = vsel %vm1006, %v1005, -inf
        %1011 = vmax.xlane.f32.xlu0 %v1010
        %v1012 = vpop.xlane.xlu0 %1011
        %v1013 = vsub.f32 %v1004, %v1009
        %v1014 = vsub.f32 %v1005, %v1012
        %v1015 = vmul.f32 %v1013, 1.442695
        %v1016 = vpow.pop %v1015
        %v1017 = vmul.f32 %v1014, 1.442695
        %v1018 = vpow.pop %v1017
        %v1019 = vsel %vm1006, %v1016, 0.0
        %1020 = vadd.xlane.f32.xlu0 %v1019
        %v1021 = vpop.xlane.xlu0 %1020
        %v1022 = vsel %vm1006, %v1018, 0.0
        %1023 = vadd.xlane.f32.xlu0 %v1022
        %v1024 = vpop.xlane.xlu0 %1023
        %v1025 = vrcp.pop %v1021
        %v1026 = vrcp.pop %v1024
        %v1027 = vmul.f32 %v1016, %v1025
        %v1028 = vmul.f32 %v1018, %v1026
        %1029 = vrot.lane.b32.xlu0 %v821, 64
        %v1030 = vpop.permute.xlu0 %1029
        %v1033 = vsel %vm1006, %v1027, 0
        %1035 = vmatprep.subr.mxu0 0.0
        %1036 = vmatpush1.msra.mxu0 %v1030
        %1037 = vmatprep.subr.mxu0 0.0
        %1038 = vmatpush1.msra.mxu0 0.0
        %1039 = vmatprep.subr.mxu0 0.0
        %1040 = vmatpush1.msra.mxu0 0.0
        %1041 = vmatprep.subr.mxu0 0.0
        %1042 = vmatpush1.msra.mxu0 0.0
        %1043 = vmatprep.subr.mxu0 0.0
        %1044 = vmatpush1.msra.mxu0 0.0
        %1045 = vmatprep.subr.mxu0 0.0
        %1046 = vmatpush1.msra.mxu0 0.0
        %1047 = vmatprep.subr.mxu0 0.0
        %1048 = vmatpush1.msra.mxu0 0.0
        %1049 = vmatprep.subr.mxu0 0.0
        %1050 = vmatpush1.msra.mxu0 0.0
        %1051 = vmatprep.subr.mxu0 0.0
        %1052 = vmatpush1.msra.mxu0 0.0
        %1053 = vmatprep.subr.mxu0 0.0
        %1054 = vmatpush1.msra.mxu0 0.0
        %1055 = vmatprep.subr.mxu0 0.0
        %1056 = vmatpush1.msra.mxu0 0.0
        %1057 = vmatprep.subr.mxu0 0.0
        %1058 = vmatpush1.msra.mxu0 0.0
        %1059 = vmatprep.subr.mxu0 0.0
        %1060 = vmatpush1.msra.mxu0 0.0
        %1061 = vmatprep.subr.mxu0 0.0
        %1062 = vmatpush1.msra.mxu0 0.0
        %1063 = vmatprep.subr.mxu0 0.0
        %1064 = vmatpush1.msra.mxu0 0.0
        %1065 = vmatprep.subr.mxu0 0.0
        %1066 = vmatpush1.msra.mxu0 0.0
        %1067 = vmatprep.subr.mxu0 0.0
        %1068 = vmatpush1.msra.mxu0 0.0
        %1069 = vmatprep.subr.mxu0 0.0
        %1070 = vmatpush1.msra.mxu0 0.0
        %1071 = vmatprep.subr.mxu0 0.0
        %1072 = vmatpush1.msra.mxu0 0.0
        %1073 = vmatprep.subr.mxu0 0.0
        %1074 = vmatpush1.msra.mxu0 0.0
        %1075 = vmatprep.subr.mxu0 0.0
        %1076 = vmatpush1.msra.mxu0 0.0
        %1077 = vmatprep.subr.mxu0 0.0
        %1078 = vmatpush1.msra.mxu0 0.0
        %1079 = vmatprep.subr.mxu0 0.0
        %1080 = vmatpush1.msra.mxu0 0.0
        %1081 = vmatprep.subr.mxu0 0.0
        %1082 = vmatpush1.msra.mxu0 0.0
        %1083 = vmatprep.subr.mxu0 0.0
        %1084 = vmatpush1.msra.mxu0 0.0
        %1085 = vmatprep.subr.mxu0 0.0
        %1086 = vmatpush1.msra.mxu0 0.0
        %1087 = vmatprep.subr.mxu0 0.0
        %1088 = vmatpush1.msra.mxu0 0.0
        %1089 = vmatprep.subr.mxu0 0.0
        %1090 = vmatpush1.msra.mxu0 0.0
        %1091 = vmatprep.subr.mxu0 0.0
        %1092 = vmatpush1.msra.mxu0 0.0
        %1093 = vmatprep.subr.mxu0 0.0
        %1094 = vmatpush1.msra.mxu0 0.0
        %1095 = vmatprep.subr.mxu0 0.0
        %1096 = vmatpush1.msra.mxu0 0.0
        %1097 = vmatprep.subr.mxu0 0.0
        %1098 = vmatpush1.msra.mxu0 0.0
        %1099 = vmatprep.mubr.f32.mxu0 0.0
        %1100 = vmatmul.mubr.f32.gmra.mrb[0].mxu0 %v1033
        %v1101 = vpop.f32.mrb[0].mxu0
        %v1102 = vadd.f32 0.0, %v1101
        %v1103 = vpop.f32.mrb[0].mxu0
        %1104 = vdwg.mxu0
        %1105 = vrot.lane.b32.xlu0 %v826, 64
        %v1106 = vpop.permute.xlu0 %1105
        %v1109 = vsel %vm1006, %v1028, 0
        %1111 = vmatprep.subr.mxu0 0.0
        %1112 = vmatpush1.msra.mxu0 %v1106
        %1113 = vmatprep.subr.mxu0 0.0
        %1114 = vmatpush1.msra.mxu0 0.0
        %1115 = vmatprep.subr.mxu0 0.0
        %1116 = vmatpush1.msra.mxu0 0.0
        %1117 = vmatprep.subr.mxu0 0.0
        %1118 = vmatpush1.msra.mxu0 0.0
        %1119 = vmatprep.subr.mxu0 0.0
        %1120 = vmatpush1.msra.mxu0 0.0
        %1121 = vmatprep.subr.mxu0 0.0
        %1122 = vmatpush1.msra.mxu0 0.0
        %1123 = vmatprep.subr.mxu0 0.0
        %1124 = vmatpush1.msra.mxu0 0.0
        %1125 = vmatprep.subr.mxu0 0.0
        %1126 = vmatpush1.msra.mxu0 0.0
        %1127 = vmatprep.subr.mxu0 0.0
        %1128 = vmatpush1.msra.mxu0 0.0
        %1129 = vmatprep.subr.mxu0 0.0
        %1130 = vmatpush1.msra.mxu0 0.0
        %1131 = vmatprep.subr.mxu0 0.0
        %1132 = vmatpush1.msra.mxu0 0.0
        %1133 = vmatprep.subr.mxu0 0.0
        %1134 = vmatpush1.msra.mxu0 0.0
        %1135 = vmatprep.subr.mxu0 0.0
        %1136 = vmatpush1.msra.mxu0 0.0
        %1137 = vmatprep.subr.mxu0 0.0
        %1138 = vmatpush1.msra.mxu0 0.0
        %1139 = vmatprep.subr.mxu0 0.0
        %1140 = vmatpush1.msra.mxu0 0.0
        %1141 = vmatprep.subr.mxu0 0.0
        %1142 = vmatpush1.msra.mxu0 0.0
        %1143 = vmatprep.subr.mxu0 0.0
        %1144 = vmatpush1.msra.mxu0 0.0
        %1145 = vmatprep.subr.mxu0 0.0
        %1146 = vmatpush1.msra.mxu0 0.0
        %1147 = vmatprep.subr.mxu0 0.0
        %1148 = vmatpush1.msra.mxu0 0.0
        %1149 = vmatprep.subr.mxu0 0.0
        %1150 = vmatpush1.msra.mxu0 0.0
        %1151 = vmatprep.subr.mxu0 0.0
        %1152 = vmatpush1.msra.mxu0 0.0
        %1153 = vmatprep.subr.mxu0 0.0
        %1154 = vmatpush1.msra.mxu0 0.0
        %1155 = vmatprep.subr.mxu0 0.0
        %1156 = vmatpush1.msra.mxu0 0.0
        %1157 = vmatprep.subr.mxu0 0.0
        %1158 = vmatpush1.msra.mxu0 0.0
        %1159 = vmatprep.subr.mxu0 0.0
        %1160 = vmatpush1.msra.mxu0 0.0
        %1161 = vmatprep.subr.mxu0 0.0
        %1162 = vmatpush1.msra.mxu0 0.0
        %1163 = vmatprep.subr.mxu0 0.0
        %1164 = vmatpush1.msra.mxu0 0.0
        %1165 = vmatprep.subr.mxu0 0.0
        %1166 = vmatpush1.msra.mxu0 0.0
        %1167 = vmatprep.subr.mxu0 0.0
        %1168 = vmatpush1.msra.mxu0 0.0
        %1169 = vmatprep.subr.mxu0 0.0
        %1170 = vmatpush1.msra.mxu0 0.0
        %1171 = vmatprep.subr.mxu0 0.0
        %1172 = vmatpush1.msra.mxu0 0.0
        %1173 = vmatprep.subr.mxu0 0.0
        %1174 = vmatpush1.msra.mxu0 0.0
        %1175 = vmatprep.mubr.f32.mxu0 0.0
        %1176 = vmatmul.mubr.f32.gmra.mrb[0].mxu0 %v1109
        %v1177 = vpop.f32.mrb[0].mxu0
        %v1178 = vadd.f32 0.0, %v1177
        %v1179 = vpop.f32.mrb[0].mxu0
        %1180 = vdwg.mxu0
        %1181 = vrot.lane.b32.xlu0 %v821, 112
        %v1182 = vpop.permute.xlu0 %1181
        %1183 = vrot.lane.b32.xlu0 %v821, 80
        %v1184 = vpop.permute.xlu0 %1183
        %v1185 = vsel %vm838, %v1182, 0
        %v1187 = vsel %vm838, %v1184, 0
        %1189 = vmatprep.subr.mxu0 0.0
        %1190 = vmatpush1.xpose.msra.mxu0 %v1187
        %1191 = vmatprep.subr.mxu0 0.0
        %1192 = vmatpush1.xpose.msra.mxu0 0.0
        %1193 = vmatprep.subr.mxu0 0.0
        %1194 = vmatpush1.xpose.msra.mxu0 0.0
        %1195 = vmatprep.subr.mxu0 0.0
        %1196 = vmatpush1.xpose.msra.mxu0 0.0
        %1197 = vmatprep.subr.mxu0 0.0
        %1198 = vmatpush1.xpose.msra.mxu0 0.0
        %1199 = vmatprep.subr.mxu0 0.0
        %1200 = vmatpush1.xpose.msra.mxu0 0.0
        %1201 = vmatprep.subr.mxu0 0.0
        %1202 = vmatpush1.xpose.msra.mxu0 0.0
        %1203 = vmatprep.subr.mxu0 0.0
        %1204 = vmatpush1.xpose.msra.mxu0 0.0
        %1205 = vmatprep.subr.mxu0 0.0
        %1206 = vmatpush1.xpose.msra.mxu0 0.0
        %1207 = vmatprep.subr.mxu0 0.0
        %1208 = vmatpush1.xpose.msra.mxu0 0.0
        %1209 = vmatprep.subr.mxu0 0.0
        %1210 = vmatpush1.xpose.msra.mxu0 0.0
        %1211 = vmatprep.subr.mxu0 0.0
        %1212 = vmatpush1.xpose.msra.mxu0 0.0
        %1213 = vmatprep.subr.mxu0 0.0
        %1214 = vmatpush1.xpose.msra.mxu0 0.0
        %1215 = vmatprep.subr.mxu0 0.0
        %1216 = vmatpush1.xpose.msra.mxu0 0.0
        %1217 = vmatprep.subr.mxu0 0.0
        %1218 = vmatpush1.xpose.msra.mxu0 0.0
        %1219 = vmatprep.subr.mxu0 0.0
        %1220 = vmatpush1.xpose.msra.mxu0 0.0
        %1221 = vmatprep.subr.mxu0 0.0
        %1222 = vmatpush1.xpose.msra.mxu0 0.0
        %1223 = vmatprep.subr.mxu0 0.0
        %1224 = vmatpush1.xpose.msra.mxu0 0.0
        %1225 = vmatprep.subr.mxu0 0.0
        %1226 = vmatpush1.xpose.msra.mxu0 0.0
        %1227 = vmatprep.subr.mxu0 0.0
        %1228 = vmatpush1.xpose.msra.mxu0 0.0
        %1229 = vmatprep.subr.mxu0 0.0
        %1230 = vmatpush1.xpose.msra.mxu0 0.0
        %1231 = vmatprep.subr.mxu0 0.0
        %1232 = vmatpush1.xpose.msra.mxu0 0.0
        %1233 = vmatprep.subr.mxu0 0.0
        %1234 = vmatpush1.xpose.msra.mxu0 0.0
        %1235 = vmatprep.subr.mxu0 0.0
        %1236 = vmatpush1.xpose.msra.mxu0 0.0
        %1237 = vmatprep.subr.mxu0 0.0
        %1238 = vmatpush1.xpose.msra.mxu0 0.0
        %1239 = vmatprep.subr.mxu0 0.0
        %1240 = vmatpush1.xpose.msra.mxu0 0.0
        %1241 = vmatprep.subr.mxu0 0.0
        %1242 = vmatpush1.xpose.msra.mxu0 0.0
        %1243 = vmatprep.subr.mxu0 0.0
        %1244 = vmatpush1.xpose.msra.mxu0 0.0
        %1245 = vmatprep.subr.mxu0 0.0
        %1246 = vmatpush1.xpose.msra.mxu0 0.0
        %1247 = vmatprep.subr.mxu0 0.0
        %1248 = vmatpush1.xpose.msra.mxu0 0.0
        %1249 = vmatprep.subr.mxu0 0.0
        %1250 = vmatpush1.xpose.msra.mxu0 0.0
        %1251 = vmatprep.subr.mxu0 0.0
        %1252 = vmatpush1.xpose.msra.mxu0 0.0
        %1253 = vmatprep.mubr.f32.mxu0 0.0
        %1254 = vmatmul.mubr.f32.gmra.mrb[0].mxu0 %v1185
        %v1255 = vpop.f32.mrb[0].mxu0
        %v1256 = vadd.f32 0.0, %v1255
        %v1257 = vpop.f32.mrb[0].mxu0
        %1258 = vdwg.mxu0
        %1259 = vrot.lane.b32.xlu0 %v826, 112
        %v1260 = vpop.permute.xlu0 %1259
        %1261 = vrot.lane.b32.xlu0 %v826, 80
        %v1262 = vpop.permute.xlu0 %1261
        %v1263 = vsel %vm838, %v1260, 0
        %v1265 = vsel %vm838, %v1262, 0
        %1267 = vmatprep.subr.mxu0 0.0
        %1268 = vmatpush1.xpose.msra.mxu0 %v1265
        %1269 = vmatprep.subr.mxu0 0.0
        %1270 = vmatpush1.xpose.msra.mxu0 0.0
        %1271 = vmatprep.subr.mxu0 0.0
        %1272 = vmatpush1.xpose.msra.mxu0 0.0
        %1273 = vmatprep.subr.mxu0 0.0
        %1274 = vmatpush1.xpose.msra.mxu0 0.0
        %1275 = vmatprep.subr.mxu0 0.0
        %1276 = vmatpush1.xpose.msra.mxu0 0.0
        %1277 = vmatprep.subr.mxu0 0.0
        %1278 = vmatpush1.xpose.msra.mxu0 0.0
        %1279 = vmatprep.subr.mxu0 0.0
        %1280 = vmatpush1.xpose.msra.mxu0 0.0
        %1281 = vmatprep.subr.mxu0 0.0
        %1282 = vmatpush1.xpose.msra.mxu0 0.0
        %1283 = vmatprep.subr.mxu0 0.0
        %1284 = vmatpush1.xpose.msra.mxu0 0.0
        %1285 = vmatprep.subr.mxu0 0.0
        %1286 = vmatpush1.xpose.msra.mxu0 0.0
        %1287 = vmatprep.subr.mxu0 0.0
        %1288 = vmatpush1.xpose.msra.mxu0 0.0
        %1289 = vmatprep.subr.mxu0 0.0
        %1290 = vmatpush1.xpose.msra.mxu0 0.0
        %1291 = vmatprep.subr.mxu0 0.0
        %1292 = vmatpush1.xpose.msra.mxu0 0.0
        %1293 = vmatprep.subr.mxu0 0.0
        %1294 = vmatpush1.xpose.msra.mxu0 0.0
        %1295 = vmatprep.subr.mxu0 0.0
        %1296 = vmatpush1.xpose.msra.mxu0 0.0
        %1297 = vmatprep.subr.mxu0 0.0
        %1298 = vmatpush1.xpose.msra.mxu0 0.0
        %1299 = vmatprep.subr.mxu0 0.0
        %1300 = vmatpush1.xpose.msra.mxu0 0.0
        %1301 = vmatprep.subr.mxu0 0.0
        %1302 = vmatpush1.xpose.msra.mxu0 0.0
        %1303 = vmatprep.subr.mxu0 0.0
        %1304 = vmatpush1.xpose.msra.mxu0 0.0
        %1305 = vmatprep.subr.mxu0 0.0
        %1306 = vmatpush1.xpose.msra.mxu0 0.0
        %1307 = vmatprep.subr.mxu0 0.0
        %1308 = vmatpush1.xpose.msra.mxu0 0.0
        %1309 = vmatprep.subr.mxu0 0.0
        %1310 = vmatpush1.xpose.msra.mxu0 0.0
        %1311 = vmatprep.subr.mxu0 0.0
        %1312 = vmatpush1.xpose.msra.mxu0 0.0
        %1313 = vmatprep.subr.mxu0 0.0
        %1314 = vmatpush1.xpose.msra.mxu0 0.0
        %1315 = vmatprep.subr.mxu0 0.0
        %1316 = vmatpush1.xpose.msra.mxu0 0.0
        %1317 = vmatprep.subr.mxu0 0.0
        %1318 = vmatpush1.xpose.msra.mxu0 0.0
        %1319 = vmatprep.subr.mxu0 0.0
        %1320 = vmatpush1.xpose.msra.mxu0 0.0
        %1321 = vmatprep.subr.mxu0 0.0
        %1322 = vmatpush1.xpose.msra.mxu0 0.0
        %1323 = vmatprep.subr.mxu0 0.0
        %1324 = vmatpush1.xpose.msra.mxu0 0.0
        %1325 = vmatprep.subr.mxu0 0.0
        %1326 = vmatpush1.xpose.msra.mxu0 0.0
        %1327 = vmatprep.subr.mxu0 0.0
        %1328 = vmatpush1.xpose.msra.mxu0 0.0
        %1329 = vmatprep.subr.mxu0 0.0
        %1330 = vmatpush1.xpose.msra.mxu0 0.0
        %1331 = vmatprep.mubr.f32.mxu0 0.0
        %1332 = vmatmul.mubr.f32.gmra.mrb[0].mxu0 %v1263
        %v1333 = vpop.f32.mrb[0].mxu0
        %v1334 = vadd.f32 0.0, %v1333
        %v1335 = vpop.f32.mrb[0].mxu0
        %1336 = vdwg.mxu0
        %v1337 = vmul.f32 %v1256, 0.25
        %v1338 = vmul.f32 %v1334, 0.25
        %v1339 = vadd.f32 %v1337, %v997
        %v1340 = vadd.f32 %v1338, %v1001
        %v1341 = vsel %vm1006, %v1339, -inf
        %1342 = vmax.xlane.f32.xlu0 %v1341
        %v1343 = vpop.xlane.xlu0 %1342
        %v1344 = vsel %vm1006, %v1340, -inf
        %1345 = vmax.xlane.f32.xlu0 %v1344
        %v1346 = vpop.xlane.xlu0 %1345
        %v1347 = vsub.f32 %v1339, %v1343
        %v1348 = vsub.f32 %v1340, %v1346
        %v1349 = vmul.f32 %v1347, 1.442695
        %v1350 = vpow.pop %v1349
        %v1351 = vmul.f32 %v1348, 1.442695
        %v1352 = vpow.pop %v1351
        %v1353 = vsel %vm1006, %v1350, 0.0
        %1354 = vadd.xlane.f32.xlu0 %v1353
        %v1355 = vpop.xlane.xlu0 %1354
        %v1356 = vsel %vm1006, %v1352, 0.0
        %1357 = vadd.xlane.f32.xlu0 %v1356
        %v1358 = vpop.xlane.xlu0 %1357
        %v1359 = vrcp.pop %v1355
        %v1360 = vrcp.pop %v1358
        %v1361 = vmul.f32 %v1350, %v1359
        %v1362 = vmul.f32 %v1352, %v1360
        %1363 = vrot.lane.b32.xlu0 %v821, 48
        %v1364 = vpop.permute.xlu0 %1363
        %v1367 = vsel %vm1006, %v1361, 0
        %1369 = vmatprep.subr.mxu0 0.0
        %1370 = vmatpush1.msra.mxu0 %v1364
        %1371 = vmatprep.subr.mxu0 0.0
        %1372 = vmatpush1.msra.mxu0 0.0
        %1373 = vmatprep.subr.mxu0 0.0
        %1374 = vmatpush1.msra.mxu0 0.0
        %1375 = vmatprep.subr.mxu0 0.0
        %1376 = vmatpush1.msra.mxu0 0.0
        %1377 = vmatprep.subr.mxu0 0.0
        %1378 = vmatpush1.msra.mxu0 0.0
        %1379 = vmatprep.subr.mxu0 0.0
        %1380 = vmatpush1.msra.mxu0 0.0
        %1381 = vmatprep.subr.mxu0 0.0
        %1382 = vmatpush1.msra.mxu0 0.0
        %1383 = vmatprep.subr.mxu0 0.0
        %1384 = vmatpush1.msra.mxu0 0.0
        %1385 = vmatprep.subr.mxu0 0.0
        %1386 = vmatpush1.msra.mxu0 0.0
        %1387 = vmatprep.subr.mxu0 0.0
        %1388 = vmatpush1.msra.mxu0 0.0
        %1389 = vmatprep.subr.mxu0 0.0
        %1390 = vmatpush1.msra.mxu0 0.0
        %1391 = vmatprep.subr.mxu0 0.0
        %1392 = vmatpush1.msra.mxu0 0.0
        %1393 = vmatprep.subr.mxu0 0.0
        %1394 = vmatpush1.msra.mxu0 0.0
        %1395 = vmatprep.subr.mxu0 0.0
        %1396 = vmatpush1.msra.mxu0 0.0
        %1397 = vmatprep.subr.mxu0 0.0
        %1398 = vmatpush1.msra.mxu0 0.0
        %1399 = vmatprep.subr.mxu0 0.0
        %1400 = vmatpush1.msra.mxu0 0.0
        %1401 = vmatprep.subr.mxu0 0.0
        %1402 = vmatpush1.msra.mxu0 0.0
        %1403 = vmatprep.subr.mxu0 0.0
        %1404 = vmatpush1.msra.mxu0 0.0
        %1405 = vmatprep.subr.mxu0 0.0
        %1406 = vmatpush1.msra.mxu0 0.0
        %1407 = vmatprep.subr.mxu0 0.0
        %1408 = vmatpush1.msra.mxu0 0.0
        %1409 = vmatprep.subr.mxu0 0.0
        %1410 = vmatpush1.msra.mxu0 0.0
        %1411 = vmatprep.subr.mxu0 0.0
        %1412 = vmatpush1.msra.mxu0 0.0
        %1413 = vmatprep.subr.mxu0 0.0
        %1414 = vmatpush1.msra.mxu0 0.0
        %1415 = vmatprep.subr.mxu0 0.0
        %1416 = vmatpush1.msra.mxu0 0.0
        %1417 = vmatprep.subr.mxu0 0.0
        %1418 = vmatpush1.msra.mxu0 0.0
        %1419 = vmatprep.subr.mxu0 0.0
        %1420 = vmatpush1.msra.mxu0 0.0
        %1421 = vmatprep.subr.mxu0 0.0
        %1422 = vmatpush1.msra.mxu0 0.0
        %1423 = vmatprep.subr.mxu0 0.0
        %1424 = vmatpush1.msra.mxu0 0.0
        %1425 = vmatprep.subr.mxu0 0.0
        %1426 = vmatpush1.msra.mxu0 0.0
        %1427 = vmatprep.subr.mxu0 0.0
        %1428 = vmatpush1.msra.mxu0 0.0
        %1429 = vmatprep.subr.mxu0 0.0
        %1430 = vmatpush1.msra.mxu0 0.0
        %1431 = vmatprep.subr.mxu0 0.0
        %1432 = vmatpush1.msra.mxu0 0.0
        %1433 = vmatprep.mubr.f32.mxu0 0.0
        %1434 = vmatmul.mubr.f32.gmra.mrb[0].mxu0 %v1367
        %v1435 = vpop.f32.mrb[0].mxu0
        %v1436 = vadd.f32 0.0, %v1435
        %v1437 = vpop.f32.mrb[0].mxu0
        %1438 = vdwg.mxu0
        %1439 = vrot.lane.b32.xlu0 %v826, 48
        %v1440 = vpop.permute.xlu0 %1439
        %v1443 = vsel %vm1006, %v1362, 0
        %1445 = vmatprep.subr.mxu0 0.0
        %1446 = vmatpush1.msra.mxu0 %v1440
        %1447 = vmatprep.subr.mxu0 0.0
        %1448 = vmatpush1.msra.mxu0 0.0
        %1449 = vmatprep.subr.mxu0 0.0
        %1450 = vmatpush1.msra.mxu0 0.0
        %1451 = vmatprep.subr.mxu0 0.0
        %1452 = vmatpush1.msra.mxu0 0.0
        %1453 = vmatprep.subr.mxu0 0.0
        %1454 = vmatpush1.msra.mxu0 0.0
        %1455 = vmatprep.subr.mxu0 0.0
        %1456 = vmatpush1.msra.mxu0 0.0
        %1457 = vmatprep.subr.mxu0 0.0
        %1458 = vmatpush1.msra.mxu0 0.0
        %1459 = vmatprep.subr.mxu0 0.0
        %1460 = vmatpush1.msra.mxu0 0.0
        %1461 = vmatprep.subr.mxu0 0.0
        %1462 = vmatpush1.msra.mxu0 0.0
        %1463 = vmatprep.subr.mxu0 0.0
        %1464 = vmatpush1.msra.mxu0 0.0
        %1465 = vmatprep.subr.mxu0 0.0
        %1466 = vmatpush1.msra.mxu0 0.0
        %1467 = vmatprep.subr.mxu0 0.0
        %1468 = vmatpush1.msra.mxu0 0.0
        %1469 = vmatprep.subr.mxu0 0.0
        %1470 = vmatpush1.msra.mxu0 0.0
        %1471 = vmatprep.subr.mxu0 0.0
        %1472 = vmatpush1.msra.mxu0 0.0
        %1473 = vmatprep.subr.mxu0 0.0
        %1474 = vmatpush1.msra.mxu0 0.0
        %1475 = vmatprep.subr.mxu0 0.0
        %1476 = vmatpush1.msra.mxu0 0.0
        %1477 = vmatprep.subr.mxu0 0.0
        %1478 = vmatpush1.msra.mxu0 0.0
        %1479 = vmatprep.subr.mxu0 0.0
        %1480 = vmatpush1.msra.mxu0 0.0
        %1481 = vmatprep.subr.mxu0 0.0
        %1482 = vmatpush1.msra.mxu0 0.0
        %1483 = vmatprep.subr.mxu0 0.0
        %1484 = vmatpush1.msra.mxu0 0.0
        %1485 = vmatprep.subr.mxu0 0.0
        %1486 = vmatpush1.msra.mxu0 0.0
        %1487 = vmatprep.subr.mxu0 0.0
        %1488 = vmatpush1.msra.mxu0 0.0
        %1489 = vmatprep.subr.mxu0 0.0
        %1490 = vmatpush1.msra.mxu0 0.0
        %1491 = vmatprep.subr.mxu0 0.0
        %1492 = vmatpush1.msra.mxu0 0.0
        %1493 = vmatprep.subr.mxu0 0.0
        %1494 = vmatpush1.msra.mxu0 0.0
        %1495 = vmatprep.subr.mxu0 0.0
        %1496 = vmatpush1.msra.mxu0 0.0
        %1497 = vmatprep.subr.mxu0 0.0
        %1498 = vmatpush1.msra.mxu0 0.0
        %1499 = vmatprep.subr.mxu0 0.0
        %1500 = vmatpush1.msra.mxu0 0.0
        %1501 = vmatprep.subr.mxu0 0.0
        %1502 = vmatpush1.msra.mxu0 0.0
        %1503 = vmatprep.subr.mxu0 0.0
        %1504 = vmatpush1.msra.mxu0 0.0
        %1505 = vmatprep.subr.mxu0 0.0
        %1506 = vmatpush1.msra.mxu0 0.0
        %1507 = vmatprep.subr.mxu0 0.0
        %1508 = vmatpush1.msra.mxu0 0.0
        %1509 = vmatprep.mubr.f32.mxu0 0.0
        %1510 = vmatmul.mubr.f32.gmra.mrb[0].mxu0 %v1443
        %v1511 = vpop.f32.mrb[0].mxu0
        %v1512 = vadd.f32 0.0, %v1511
        %v1513 = vpop.f32.mrb[0].mxu0
        %1514 = vdwg.mxu0
        %v1516 = vsel %vm838, %v1436, 0
        %v1519 = vsel %vm838, %v1512, 0
        %1521 = vmatprep.subr.mxu0 0.0
        %1522 = vmatpush1.msra.mxu0 %v833
        %1523 = vmatprep.subr.mxu0 0.0
        %1524 = vmatpush1.msra.mxu0 %v834
        %1525 = vmatprep.subr.mxu0 0.0
        %1526 = vmatpush1.msra.mxu0 0.0
        %1527 = vmatprep.subr.mxu0 0.0
        %1528 = vmatpush1.msra.mxu0 0.0
        %1529 = vmatprep.subr.mxu0 0.0
        %1530 = vmatpush1.msra.mxu0 0.0
        %1531 = vmatprep.subr.mxu0 0.0
        %1532 = vmatpush1.msra.mxu0 0.0
        %1533 = vmatprep.subr.mxu0 0.0
        %1534 = vmatpush1.msra.mxu0 0.0
        %1535 = vmatprep.subr.mxu0 0.0
        %1536 = vmatpush1.msra.mxu0 0.0
        %1537 = vmatprep.subr.mxu0 0.0
        %1538 = vmatpush1.msra.mxu0 0.0
        %1539 = vmatprep.subr.mxu0 0.0
        %1540 = vmatpush1.msra.mxu0 0.0
        %1541 = vmatprep.subr.mxu0 0.0
        %1542 = vmatpush1.msra.mxu0 0.0
        %1543 = vmatprep.subr.mxu0 0.0
        %1544 = vmatpush1.msra.mxu0 0.0
        %1545 = vmatprep.subr.mxu0 0.0
        %1546 = vmatpush1.msra.mxu0 0.0
        %1547 = vmatprep.subr.mxu0 0.0
        %1548 = vmatpush1.msra.mxu0 0.0
        %1549 = vmatprep.subr.mxu0 0.0
        %1550 = vmatpush1.msra.mxu0 0.0
        %1551 = vmatprep.subr.mxu0 0.0
        %1552 = vmatpush1.msra.mxu0 0.0
        %1553 = vmatprep.subr.mxu0 0.0
        %1554 = vmatpush1.msra.mxu0 0.0
        %1555 = vmatprep.subr.mxu0 0.0
        %1556 = vmatpush1.msra.mxu0 0.0
        %1557 = vmatprep.subr.mxu0 0.0
        %1558 = vmatpush1.msra.mxu0 0.0
        %1559 = vmatprep.subr.mxu0 0.0
        %1560 = vmatpush1.msra.mxu0 0.0
        %1561 = vmatprep.subr.mxu0 0.0
        %1562 = vmatpush1.msra.mxu0 0.0
        %1563 = vmatprep.subr.mxu0 0.0
        %1564 = vmatpush1.msra.mxu0 0.0
        %1565 = vmatprep.subr.mxu0 0.0
        %1566 = vmatpush1.msra.mxu0 0.0
        %1567 = vmatprep.subr.mxu0 0.0
        %1568 = vmatpush1.msra.mxu0 0.0
        %1569 = vmatprep.subr.mxu0 0.0
        %1570 = vmatpush1.msra.mxu0 0.0
        %1571 = vmatprep.subr.mxu0 0.0
        %1572 = vmatpush1.msra.mxu0 0.0
        %1573 = vmatprep.subr.mxu0 0.0
        %1574 = vmatpush1.msra.mxu0 0.0
        %1575 = vmatprep.subr.mxu0 0.0
        %1576 = vmatpush1.msra.mxu0 0.0
        %1577 = vmatprep.subr.mxu0 0.0
        %1578 = vmatpush1.msra.mxu0 0.0
        %1579 = vmatprep.subr.mxu0 0.0
        %1580 = vmatpush1.msra.mxu0 0.0
        %1581 = vmatprep.subr.mxu0 0.0
        %1582 = vmatpush1.msra.mxu0 0.0
        %1583 = vmatprep.subr.mxu0 0.0
        %1584 = vmatpush1.msra.mxu0 0.0
        %1585 = vmatprep.mubr.f32.mxu0 0.0
        %1586 = vmatmul.mubr.f32.gmra.mrb[0].mxu0 %v1516
        %v1587 = vpop.f32.mrb[0].mxu0
        %v1588 = vadd.f32 0.0, %v1587
        %v1589 = vpop.f32.mrb[0].mxu0
        %1590 = vmatprep.mubr.f32.mxu0 0.0
        %1591 = vmatmul.mubr.f32.gmra.mrb[0].mxu0 %v1519
        %v1592 = vpop.f32.mrb[0].mxu0
        %v1593 = vadd.f32 0.0, %v1592
        %v1594 = vpop.f32.mrb[0].mxu0
        %1595 = vdwg.mxu0
        %v1597 = vsel %vm838, %v1102, 0
        %v1600 = vsel %vm838, %v1178, 0
        %1602 = vmatprep.subr.mxu0 0.0
        %1603 = vmatpush1.msra.mxu0 %v831
        %1604 = vmatprep.subr.mxu0 0.0
        %1605 = vmatpush1.msra.mxu0 %v832
        %1606 = vmatprep.subr.mxu0 0.0
        %1607 = vmatpush1.msra.mxu0 0.0
        %1608 = vmatprep.subr.mxu0 0.0
        %1609 = vmatpush1.msra.mxu0 0.0
        %1610 = vmatprep.subr.mxu0 0.0
        %1611 = vmatpush1.msra.mxu0 0.0
        %1612 = vmatprep.subr.mxu0 0.0
        %1613 = vmatpush1.msra.mxu0 0.0
        %1614 = vmatprep.subr.mxu0 0.0
        %1615 = vmatpush1.msra.mxu0 0.0
        %1616 = vmatprep.subr.mxu0 0.0
        %1617 = vmatpush1.msra.mxu0 0.0
        %1618 = vmatprep.subr.mxu0 0.0
        %1619 = vmatpush1.msra.mxu0 0.0
        %1620 = vmatprep.subr.mxu0 0.0
        %1621 = vmatpush1.msra.mxu0 0.0
        %1622 = vmatprep.subr.mxu0 0.0
        %1623 = vmatpush1.msra.mxu0 0.0
        %1624 = vmatprep.subr.mxu0 0.0
        %1625 = vmatpush1.msra.mxu0 0.0
        %1626 = vmatprep.subr.mxu0 0.0
        %1627 = vmatpush1.msra.mxu0 0.0
        %1628 = vmatprep.subr.mxu0 0.0
        %1629 = vmatpush1.msra.mxu0 0.0
        %1630 = vmatprep.subr.mxu0 0.0
        %1631 = vmatpush1.msra.mxu0 0.0
        %1632 = vmatprep.subr.mxu0 0.0
        %1633 = vmatpush1.msra.mxu0 0.0
        %1634 = vmatprep.subr.mxu0 0.0
        %1635 = vmatpush1.msra.mxu0 0.0
        %1636 = vmatprep.subr.mxu0 0.0
        %1637 = vmatpush1.msra.mxu0 0.0
        %1638 = vmatprep.subr.mxu0 0.0
        %1639 = vmatpush1.msra.mxu0 0.0
        %1640 = vmatprep.subr.mxu0 0.0
        %1641 = vmatpush1.msra.mxu0 0.0
        %1642 = vmatprep.subr.mxu0 0.0
        %1643 = vmatpush1.msra.mxu0 0.0
        %1644 = vmatprep.subr.mxu0 0.0
        %1645 = vmatpush1.msra.mxu0 0.0
        %1646 = vmatprep.subr.mxu0 0.0
        %1647 = vmatpush1.msra.mxu0 0.0
        %1648 = vmatprep.subr.mxu0 0.0
        %1649 = vmatpush1.msra.mxu0 0.0
        %1650 = vmatprep.subr.mxu0 0.0
        %1651 = vmatpush1.msra.mxu0 0.0
        %1652 = vmatprep.subr.mxu0 0.0
        %1653 = vmatpush1.msra.mxu0 0.0
        %1654 = vmatprep.subr.mxu0 0.0
        %1655 = vmatpush1.msra.mxu0 0.0
        %1656 = vmatprep.subr.mxu0 0.0
        %1657 = vmatpush1.msra.mxu0 0.0
        %1658 = vmatprep.subr.mxu0 0.0
        %1659 = vmatpush1.msra.mxu0 0.0
        %1660 = vmatprep.subr.mxu0 0.0
        %1661 = vmatpush1.msra.mxu0 0.0
        %1662 = vmatprep.subr.mxu0 0.0
        %1663 = vmatpush1.msra.mxu0 0.0
        %1664 = vmatprep.subr.mxu0 0.0
        %1665 = vmatpush1.msra.mxu0 0.0
        %1666 = vmatprep.mubr.f32.mxu0 0.0
        %1667 = vmatmul.mubr.f32.gmra.mrb[0].mxu0 %v1597
        %v1668 = vpop.f32.mrb[0].mxu0
        %v1669 = vadd.f32 %v1588, %v1668
        %v1670 = vpop.f32.mrb[0].mxu0
        %1671 = vmatprep.mubr.f32.mxu0 0.0
        %1672 = vmatmul.mubr.f32.gmra.mrb[0].mxu0 %v1600
        %v1673 = vpop.f32.mrb[0].mxu0
        %v1674 = vadd.f32 %v1593, %v1673
        %v1675 = vpop.f32.mrb[0].mxu0
        %1676 = vdwg.mxu0
        %v1677 = vld [vmem:[%s651] sm:$0x1]
        %v1679 = vlaneseq
        %v1680 = vshrl.u32 %v1679, 7
        %v1681 = vsub.s32 0, %v1680
        %v1682 = vrot.slane %v1677, %v1681
        %v1684 = vadd.f32 %v1669, %v1682
        %v1685 = vadd.f32 %v1674, %v1682
        %v1686 = vadd.f32 %v1684, %v734
        %v1687 = vadd.f32 %v1685, %v735
        %v1688 = vld [vmem:[%s654] sm:$0x1]
        %v1689 = vld [vmem:[%s657] sm:$0x1]
        %v1690 = vsel %vm747, %v1686, 0.0
        %1691 = vadd.xlane.f32.xlu0 %v1690
        %v1692 = vpop.xlane.xlu0 %1691
        %v1693 = vsel %vm747, %v1687, 0.0
        %1694 = vadd.xlane.f32.xlu0 %v1693
        %v1695 = vpop.xlane.xlu0 %1694
        %v1696 = vrcp.pop 32.0
        %v1697 = vmul.f32 %v1692, %v1696
        %v1698 = vmul.f32 %v1695, %v1696
        %v1699 = vsub.f32 %v1686, %v1697
        %v1700 = vsub.f32 %v1687, %v1698
        %v1701 = vmul.f32 %v1699, %v1699
        %v1702 = vmul.f32 %v1700, %v1700
        %v1703 = vsel %vm747, %v1701, 0.0
        %1704 = vadd.xlane.f32.xlu0 %v1703
        %v1705 = vpop.xlane.xlu0 %1704
        %v1706 = vsel %vm747, %v1702, 0.0
        %1707 = vadd.xlane.f32.xlu0 %v1706
        %v1708 = vpop.xlane.xlu0 %1707
        %v1709 = vmul.f32 %v1705, %v1696
        %v1710 = vmul.f32 %v1708, %v1696
        %v1711 = vadd.f32 %v1709, 1e-05
        %v1712 = vadd.f32 %v1710, 1e-05
        %v1713 = vrsqrt.pop %v1711
        %v1714 = vrsqrt.pop %v1712
        %v1715 = vmul.f32 %v1699, %v1713
        %v1716 = vmul.f32 %v1700, %v1714
        %v1718 = vlaneseq
        %v1719 = vshrl.u32 %v1718, 7
        %v1720 = vsub.s32 0, %v1719
        %v1721 = vrot.slane %v1688, %v1720
        %v1723 = vmul.f32 %v1715, %v1721
        %v1724 = vmul.f32 %v1716, %v1721
        %v1726 = vlaneseq
        %v1727 = vshrl.u32 %v1726, 7
        %v1728 = vsub.s32 0, %v1727
        %v1729 = vrot.slane %v1689, %v1728
        %v1731 = vadd.f32 %v1723, %v1729
        %v1732 = vadd.f32 %v1724, %v1729
        %v1733 = vld [vmem:[%s662] sm:$0xff]
        %v1734 = vld [vmem:[%s662 + $0x8] sm:$0xff]
        %v1735 = vld [vmem:[%s662 + $0x10] sm:$0xff]
        %v1736 = vld [vmem:[%s662 + $0x18] sm:$0xff]
        %v1737 = vld [vmem:[%s665] sm:$0x1]
        %v1739 = vlaneseq
        %v1740 = vshrl.u32 %v1739, 7
        %v1741 = vsub.s32 0, %v1740
        %v1742 = vrot.slane %v1737, %v1741
        %v1745 = vsel %vm747, %v1731, 0
        %v1748 = vsel %vm747, %v1732, 0
        %1750 = vmatprep.subr.mxu0 0.0
        %1751 = vmatpush1.msra.mxu0 %v1733
        %1752 = vmatprep.subr.mxu0 0.0
        %1753 = vmatpush1.msra.mxu0 %v1734
        %1754 = vmatprep.subr.mxu0 0.0
        %1755 = vmatpush1.msra.mxu0 %v1735
        %1756 = vmatprep.subr.mxu0 0.0
        %1757 = vmatpush1.msra.mxu0 %v1736
        %1758 = vmatprep.subr.mxu0 0.0
        %1759 = vmatpush1.msra.mxu0 0.0
        %1760 = vmatprep.subr.mxu0 0.0
        %1761 = vmatpush1.msra.mxu0 0.0
        %1762 = vmatprep.subr.mxu0 0.0
        %1763 = vmatpush1.msra.mxu0 0.0
        %1764 = vmatprep.subr.mxu0 0.0
        %1765 = vmatpush1.msra.mxu0 0.0
        %1766 = vmatprep.subr.mxu0 0.0
        %1767 = vmatpush1.msra.mxu0 0.0
        %1768 = vmatprep.subr.mxu0 0.0
        %1769 = vmatpush1.msra.mxu0 0.0
        %1770 = vmatprep.subr.mxu0 0.0
        %1771 = vmatpush1.msra.mxu0 0.0
        %1772 = vmatprep.subr.mxu0 0.0
        %1773 = vmatpush1.msra.mxu0 0.0
        %1774 = vmatprep.subr.mxu0 0.0
        %1775 = vmatpush1.msra.mxu0 0.0
        %1776 = vmatprep.subr.mxu0 0.0
        %1777 = vmatpush1.msra.mxu0 0.0
        %1778 = vmatprep.subr.mxu0 0.0
        %1779 = vmatpush1.msra.mxu0 0.0
        %1780 = vmatprep.subr.mxu0 0.0
        %1781 = vmatpush1.msra.mxu0 0.0
        %1782 = vmatprep.subr.mxu0 0.0
        %1783 = vmatpush1.msra.mxu0 0.0
        %1784 = vmatprep.subr.mxu0 0.0
        %1785 = vmatpush1.msra.mxu0 0.0
        %1786 = vmatprep.subr.mxu0 0.0
        %1787 = vmatpush1.msra.mxu0 0.0
        %1788 = vmatprep.subr.mxu0 0.0
        %1789 = vmatpush1.msra.mxu0 0.0
        %1790 = vmatprep.subr.mxu0 0.0
        %1791 = vmatpush1.msra.mxu0 0.0
        %1792 = vmatprep.subr.mxu0 0.0
        %1793 = vmatpush1.msra.mxu0 0.0
        %1794 = vmatprep.subr.mxu0 0.0
        %1795 = vmatpush1.msra.mxu0 0.0
        %1796 = vmatprep.subr.mxu0 0.0
        %1797 = vmatpush1.msra.mxu0 0.0
        %1798 = vmatprep.subr.mxu0 0.0
        %1799 = vmatpush1.msra.mxu0 0.0
        %1800 = vmatprep.subr.mxu0 0.0
        %1801 = vmatpush1.msra.mxu0 0.0
        %1802 = vmatprep.subr.mxu0 0.0
        %1803 = vmatpush1.msra.mxu0 0.0
        %1804 = vmatprep.subr.mxu0 0.0
        %1805 = vmatpush1.msra.mxu0 0.0
        %1806 = vmatprep.subr.mxu0 0.0
        %1807 = vmatpush1.msra.mxu0 0.0
        %1808 = vmatprep.subr.mxu0 0.0
        %1809 = vmatpush1.msra.mxu0 0.0
        %1810 = vmatprep.subr.mxu0 0.0
        %1811 = vmatpush1.msra.mxu0 0.0
        %1812 = vmatprep.subr.mxu0 0.0
        %1813 = vmatpush1.msra.mxu0 0.0
        %1814 = vmatprep.mubr.f32.mxu0 0.0
        %1815 = vmatmul.mubr.f32.gmra.mrb[0].mxu0 %v1745
        %v1816 = vpop.f32.mrb[0].mxu0
        %v1817 = vadd.f32 %v1742, %v1816
        %v1818 = vpop.f32.mrb[0].mxu0
        %1819 = vmatprep.mubr.f32.mxu0 0.0
        %1820 = vmatmul.mubr.f32.gmra.mrb[0].mxu0 %v1748
        %v1821 = vpop.f32.mrb[0].mxu0
        %v1822 = vadd.f32 %v1742, %v1821
        %v1823 = vpop.f32.mrb[0].mxu0
        %1824 = vdwg.mxu0
        %v1825 = vmul.f32 %v1817, 0.5
        %v1826 = vmul.f32 %v1822, 0.5
        %v1827 = vmul.f32 %v1817, 0.70710677
        %v1828 = vmul.f32 %v1822, 0.70710677
        %v1829 = vand.u32 2147483647, %v1827
        %v1830 = vand.u32 2147483647, %v1828
        %v1831 = vmul.f32 %v1829, 0.3275911
        %v1832 = vmul.f32 %v1830, 0.3275911
        %v1833 = vadd.f32 %v1831, 1.0
        %v1834 = vadd.f32 %v1832, 1.0
        %v1835 = vrcp.pop %v1833
        %v1836 = vmul.f32 1.0, %v1835
        %v1837 = vrcp.pop %v1834
        %v1838 = vmul.f32 1.0, %v1837
        %v1839 = vmul.f32 %v1836, 1.0614054
        %v1840 = vmul.f32 %v1838, 1.0614054
        %v1841 = vadd.f32 %v1839, -1.4531521
        %v1842 = vadd.f32 %v1840, -1.4531521
        %v1843 = vmul.f32 %v1836, %v1841
        %v1844 = vmul.f32 %v1838, %v1842
        %v1845 = vadd.f32 %v1843, 1.4214138
        %v1846 = vadd.f32 %v1844, 1.4214138
        %v1847 = vmul.f32 %v1836, %v1845
        %v1848 = vmul.f32 %v1838, %v1846
        %v1849 = vadd.f32 %v1847, -0.28449672
        %v1850 = vadd.f32 %v1848, -0.28449672
        %v1851 = vmul.f32 %v1836, %v1849
        %v1852 = vmul.f32 %v1838, %v1850
        %v1853 = vadd.f32 %v1851, 0.2548296
        %v1854 = vadd.f32 %v1852, 0.2548296
        %v1855 = vmul.f32 %v1836, %v1853
        %v1856 = vmul.f32 %v1838, %v1854
        %v1857 = vsub.f32 0.0, %v1829
        %v1858 = vsub.f32 0.0, %v1830
        %v1859 = vmul.f32 %v1857, %v1829
        %v1860 = vmul.f32 %v1858, %v1830
        %v1861 = vmul.f32 %v1859, 1.442695
        %v1862 = vpow.pop %v1861
        %v1863 = vmul.f32 %v1860, 1.442695
        %v1864 = vpow.pop %v1863
        %v1865 = vmul.f32 %v1855, %v1862
        %v1866 = vmul.f32 %v1856, %v1864
        %v1867 = vsub.f32 1.0, %v1865
        %v1868 = vsub.f32 1.0, %v1866
        %vm1869 = vcmp.lt.f32.partialorder %v1827, 0.0
        %vm1870 = vcmp.lt.f32.partialorder %v1828, 0.0
        %v1871 = vsub.f32 0.0, %v1867
        %v1872 = vsub.f32 0.0, %v1868
        %v1873 = vsel %vm1869, %v1871, %v1867
        %v1874 = vsel %vm1870, %v1872, %v1868
        %v1875 = vadd.f32 %v1873, 1.0
        %v1876 = vadd.f32 %v1874, 1.0
        %v1877 = vmul.f32 %v1825, %v1875
        %v1878 = vmul.f32 %v1826, %v1876
        %v1879 = vld [vmem:[%s670] sm:$0xff]
        %v1880 = vld [vmem:[%s670 + $0x8] sm:$0xff]
        %v1881 = vld [vmem:[%s670 + $0x10] sm:$0xff]
        %v1882 = vld [vmem:[%s670 + $0x18] sm:$0xff]
        %v1883 = vld [vmem:[%s670 + $0x20] sm:$0xff]
        %v1884 = vld [vmem:[%s670 + $0x28] sm:$0xff]
        %v1885 = vld [vmem:[%s670 + $0x30] sm:$0xff]
        %v1886 = vld [vmem:[%s670 + $0x38] sm:$0xff]
        %v1887 = vld [vmem:[%s673] sm:$0x1]
        %v1889 = vlaneseq
        %v1890 = vshrl.u32 %v1889, 7
        %v1891 = vsub.s32 0, %v1890
        %v1892 = vrot.slane %v1887, %v1891
        %vm1894 = vcmask 523264
        %v1896 = vsel %vm1894, %v1877, 0
        %v1899 = vsel %vm1894, %v1878, 0
        %1901 = vmatprep.subr.mxu0 0.0
        %1902 = vmatpush1.msra.mxu0 %v1879
        %1903 = vmatprep.subr.mxu0 0.0
        %1904 = vmatpush1.msra.mxu0 %v1880
        %1905 = vmatprep.subr.mxu0 0.0
        %1906 = vmatpush1.msra.mxu0 %v1881
        %1907 = vmatprep.subr.mxu0 0.0
        %1908 = vmatpush1.msra.mxu0 %v1882
        %1909 = vmatprep.subr.mxu0 0.0
        %1910 = vmatpush1.msra.mxu0 %v1883
        %1911 = vmatprep.subr.mxu0 0.0
        %1912 = vmatpush1.msra.mxu0 %v1884
        %1913 = vmatprep.subr.mxu0 0.0
        %1914 = vmatpush1.msra.mxu0 %v1885
        %1915 = vmatprep.subr.mxu0 0.0
        %1916 = vmatpush1.msra.mxu0 %v1886
        %1917 = vmatprep.subr.mxu0 0.0
        %1918 = vmatpush1.msra.mxu0 0.0
        %1919 = vmatprep.subr.mxu0 0.0
        %1920 = vmatpush1.msra.mxu0 0.0
        %1921 = vmatprep.subr.mxu0 0.0
        %1922 = vmatpush1.msra.mxu0 0.0
        %1923 = vmatprep.subr.mxu0 0.0
        %1924 = vmatpush1.msra.mxu0 0.0
        %1925 = vmatprep.subr.mxu0 0.0
        %1926 = vmatpush1.msra.mxu0 0.0
        %1927 = vmatprep.subr.mxu0 0.0
        %1928 = vmatpush1.msra.mxu0 0.0
        %1929 = vmatprep.subr.mxu0 0.0
        %1930 = vmatpush1.msra.mxu0 0.0
        %1931 = vmatprep.subr.mxu0 0.0
        %1932 = vmatpush1.msra.mxu0 0.0
        %1933 = vmatprep.subr.mxu0 0.0
        %1934 = vmatpush1.msra.mxu0 0.0
        %1935 = vmatprep.subr.mxu0 0.0
        %1936 = vmatpush1.msra.mxu0 0.0
        %1937 = vmatprep.subr.mxu0 0.0
        %1938 = vmatpush1.msra.mxu0 0.0
        %1939 = vmatprep.subr.mxu0 0.0
        %1940 = vmatpush1.msra.mxu0 0.0
        %1941 = vmatprep.subr.mxu0 0.0
        %1942 = vmatpush1.msra.mxu0 0.0
        %1943 = vmatprep.subr.mxu0 0.0
        %1944 = vmatpush1.msra.mxu0 0.0
        %1945 = vmatprep.subr.mxu0 0.0
        %1946 = vmatpush1.msra.mxu0 0.0
        %1947 = vmatprep.subr.mxu0 0.0
        %1948 = vmatpush1.msra.mxu0 0.0
        %1949 = vmatprep.subr.mxu0 0.0
        %1950 = vmatpush1.msra.mxu0 0.0
        %1951 = vmatprep.subr.mxu0 0.0
        %1952 = vmatpush1.msra.mxu0 0.0
        %1953 = vmatprep.subr.mxu0 0.0
        %1954 = vmatpush1.msra.mxu0 0.0
        %1955 = vmatprep.subr.mxu0 0.0
        %1956 = vmatpush1.msra.mxu0 0.0
        %1957 = vmatprep.subr.mxu0 0.0
        %1958 = vmatpush1.msra.mxu0 0.0
        %1959 = vmatprep.subr.mxu0 0.0
        %1960 = vmatpush1.msra.mxu0 0.0
        %1961 = vmatprep.subr.mxu0 0.0
        %1962 = vmatpush1.msra.mxu0 0.0
        %1963 = vmatprep.subr.mxu0 0.0
        %1964 = vmatpush1.msra.mxu0 0.0
        %1965 = vmatprep.mubr.f32.mxu0 0.0
        %1966 = vmatmul.mubr.f32.gmra.mrb[0].mxu0 %v1896
        %v1967 = vpop.f32.mrb[0].mxu0
        %v1968 = vadd.f32 %v1892, %v1967
        %v1969 = vpop.f32.mrb[0].mxu0
        %1970 = vmatprep.mubr.f32.mxu0 0.0
        %1971 = vmatmul.mubr.f32.gmra.mrb[0].mxu0 %v1899
        %v1972 = vpop.f32.mrb[0].mxu0
        %v1973 = vadd.f32 %v1892, %v1972
        %v1974 = vpop.f32.mrb[0].mxu0
        %1975 = vdwg.mxu0
        %v1976 = vadd.f32 %v1968, %v1731
        %v1977 = vadd.f32 %v1973, %v1732
        %v1978 = vld [vmem:[%s676] sm:$0x1]
        %v1979 = vld [vmem:[%s679] sm:$0x1]
        %v1980 = vsel %vm747, %v1976, 0.0
        %1981 = vadd.xlane.f32.xlu0 %v1980
        %v1982 = vpop.xlane.xlu0 %1981
        %v1983 = vsel %vm747, %v1977, 0.0
        %1984 = vadd.xlane.f32.xlu0 %v1983
        %v1985 = vpop.xlane.xlu0 %1984
        %v1986 = vmul.f32 %v1982, %v1696
        %v1987 = vmul.f32 %v1985, %v1696
        %v1988 = vsub.f32 %v1976, %v1986
        %v1989 = vsub.f32 %v1977, %v1987
        %v1990 = vmul.f32 %v1988, %v1988
        %v1991 = vmul.f32 %v1989, %v1989
        %v1992 = vsel %vm747, %v1990, 0.0
        %1993 = vadd.xlane.f32.xlu0 %v1992
        %v1994 = vpop.xlane.xlu0 %1993
        %v1995 = vsel %vm747, %v1991, 0.0
        %1996 = vadd.xlane.f32.xlu0 %v1995
        %v1997 = vpop.xlane.xlu0 %1996
        %v1998 = vmul.f32 %v1994, %v1696
        %v1999 = vmul.f32 %v1997, %v1696
        %v2000 = vadd.f32 %v1998, 1e-05
        %v2001 = vadd.f32 %v1999, 1e-05
        %v2002 = vrsqrt.pop %v2000
        %v2003 = vrsqrt.pop %v2001
        %v2004 = vmul.f32 %v1988, %v2002
        %v2005 = vmul.f32 %v1989, %v2003
        %v2007 = vlaneseq
        %v2008 = vshrl.u32 %v2007, 7
        %v2009 = vsub.s32 0, %v2008
        %v2010 = vrot.slane %v1978, %v2009
        %v2012 = vmul.f32 %v2004, %v2010
        %v2013 = vmul.f32 %v2005, %v2010
        %v2015 = vlaneseq
        %v2016 = vshrl.u32 %v2015, 7
        %v2017 = vsub.s32 0, %v2016
        %v2018 = vrot.slane %v1979, %v2017
        %v2020 = vadd.f32 %v2012, %v2018
        %v2021 = vadd.f32 %v2013, %v2018
        %2022 = vst.msk [vmem:[#allocation2] sm:$0xff] %vm747, %v2020
        %2023 = vst.msk [vmem:[#allocation2 + $0x8] sm:$0xff] %vm747, %v2021
        // Predicated region
        $region89: #{roberta_forward.1} parent=83 // pred_check
          %p2024 = pneg %p437
        $region90: #{roberta_forward.1} parent=83 // pred_check_branch
          %2026 = sbr.rel (%p2024) target = $region92
        $region91: #{roberta_forward.1} parent=83 // pred_region
          %s2028 = ssub.s32 256, 256
          %2029 = vsyncadd [#allocation3], %s2028
          %s2030 = sshll.u32 [#allocation2], 4
          %s2031 = int_to_ptr.vmem [resolvable:$true] %s2030
          %2036 = dma.vmem_to_hbm [thread:$0]  %s2031, 256, %s16, [#allocation3], 128, 128, 8
        $region92: #{roberta_forward.1} parent=83 // pred_fallthru
          _
        // Predicated region
        $region93: #{roberta_forward.1} parent=83 // pred_check
          %p2037 = pneg %p437
        $region94: #{roberta_forward.1} parent=83 // pred_check_branch
          %2039 = sbr.rel (%p2037) target = $region96
        $region95: #{roberta_forward.1} parent=83 // pred_region
          %2040 = dma.done [#allocation3], 256
        $region96: #{roberta_forward.1} parent=83 // pred_fallthru
          _
      $region84: #{roberta_forward.1} parent=5 // pred_fallthru
        _
      %p2041 = scmp.le.s32.totalorder 2, %s23
      // Predicated region
      $region97: #{roberta_forward.1} parent=5 // pred_check
        %p2042 = pneg %p2041
      $region98: #{roberta_forward.1} parent=5 // pred_check_branch
        %2044 = sbr.rel (%p2042) target = $region100
      $region99: #{roberta_forward.1} parent=5 // pred_region
        %s2045 = ssub.s32 %s23, 2
      $region100: #{roberta_forward.1} parent=5 // pred_fallthru
        _
    $region6: #{roberta_forward.1} parent=1 // loop_footer
      %s27 = sadd.s32 1, %s23
    $region7: #{roberta_forward.1} parent=1 // loop_footer_branch
      %22 = sbr.rel target = $region3
    $region8: #{roberta_forward.1} parent=1 // loop_exit
      _
    %2046 = vsyncpa [#allocation3], 1
    %s2047 = scalar_lea.sflag [#allocation3], 1
    %2048 = vsyncpa %s2047, 1

</llo_original>
